<compile_context>
chip_gen: v6e
topology: v6e:2x2x1
jax: 0.10.0
libtpu: 0.0.40
codegen_flags: <defaults>
</compile_context>

<pallas_src>
import functools

import jax
import jax.numpy as jnp
from jax.experimental import pallas as pl
from jax.experimental.pallas import tpu as pltpu

_EPS = 1e-5


# ------------------------------ Pallas kernels ------------------------------

def _spatial_kernel(x_ref, w1_ref, w2s_ref, w3s_ref, mask_ref,
                    pooled_ref, sa_ref, mom_ref, pbuf_ref, tbuf_ref,
                    *, H, W, d):
    """Per-image fused spatial branch + global average pool.

    x_ref:      (1, C, S)    one image, channel-major, spatial on lanes
    w1_ref:     (Cr, C)      conv1 1x1, bf16
    w2s_ref:    (Cr, 9*Cr)   conv2 3x3 dilated, tap-stacked along K, bf16
    w3s_ref:    (1, 9*Cr)    conv3 with conv4 folded in, tap-stacked, bf16
    mask_ref:   (9, S)       per-tap validity mask (zero-padding ring)
    pooled_ref: (1, C, 1)    global average pool of x (channel branch input)
    sa_ref:     (1, 1, S)    raw spatial map (BatchNorm deferred to fuse pass)
    mom_ref:    (1, 1, 2)    per-image [sum, sum_sq] of the raw spatial map
    pbuf_ref:   (Cr, S+2*Mo) VMEM slack buffer for shifted tap reads
    tbuf_ref:   (9*Cr, S)    VMEM stacked-tap matmul operand
    """
    S = H * W
    Cr = w1_ref.shape[0]
    Mo = d * W + d                        # largest |flattened tap offset|

    x = x_ref[0]                                          # (C, S) f32
    # Channel-branch global average pool fused here (x read from HBM once).
    pooled_ref[0] = jnp.mean(x, axis=-1, keepdims=True)   # (C, 1)

    # conv1 (1x1): bf16 MXU matmul, f32 accumulation.
    o1 = jnp.dot(w1_ref[...], x.astype(jnp.bfloat16),
                 preferred_element_type=jnp.float32)      # (Cr, S)

    # Zero the +-Mo slack margins (tiny); the interior is rewritten per conv.
    # Margins make out-of-frame row taps read true zeros.
    zeros_m = jnp.zeros((Cr, Mo), jnp.float32)
    pbuf_ref[:, :Mo] = zeros_m
    pbuf_ref[:, Mo + S:] = zeros_m

    def stacked_taps(feat):
        # Bulk-store the feature map into the slack buffer, then read the 9
        # dilated taps as shifted lane slices, mask the zero-padding ring and
        # stack them along the contraction dim so the whole dilated conv is a
        # single MXU matmul.
        pbuf_ref[:, Mo:Mo + S] = feat
        for ky in range(3):
            for kx in range(3):
                j = 3 * ky + kx
                off = (ky - 1) * d * W + (kx - 1) * d
                tap = pbuf_ref[:, Mo + off:Mo + off + S]       # (Cr, S)
                m = mask_ref[j:j + 1, :]                       # (1, S)
                tbuf_ref[j * Cr:(j + 1) * Cr, :] = tap * m
        return tbuf_ref[...].astype(jnp.bfloat16)              # (9*Cr, S)

    # conv2 (3x3 dilated): one (Cr, 9*Cr) @ (9*Cr, S) bf16 matmul.
    o2 = jnp.dot(w2s_ref[...], stacked_taps(o1),
                 preferred_element_type=jnp.float32)           # (Cr, S)
    # conv3 (3x3 dilated) with conv4 (1x1 -> 1ch) pre-folded on the host:
    # one (1, 9*Cr) @ (9*Cr, S) matmul producing the raw spatial map.
    sa = jnp.dot(w3s_ref[...], stacked_taps(o2),
                 preferred_element_type=jnp.float32)           # (1, S)

    sa_ref[0] = sa
    # Per-image partial moments so the channel kernel never re-reads sa.
    s1 = jnp.sum(sa)
    s2 = jnp.sum(sa * sa)
    lane = jax.lax.broadcasted_iota(jnp.int32, (1, 1, 2), 2)
    mom_ref[...] = jnp.where(lane == 0, s1, s2)


def _channel_kernel(pooled_ref, w1_ref, b1_ref, w2_ref, b2_ref, mom_ref,
                    ca_ref, stats_ref, *, n_spatial_total):
    """Channel branch MLP + BatchNorm2d(C) (batch stats), plus the global
    BatchNorm2d(1) statistics of the spatial branch from partial moments."""
    p = pooled_ref[...]                                   # (B, C)
    h = jnp.dot(p, w1_ref[...], preferred_element_type=jnp.float32) + b1_ref[...]
    o = jnp.dot(h, w2_ref[...], preferred_element_type=jnp.float32) + b2_ref[...]
    mu = jnp.mean(o, axis=0, keepdims=True)               # per-channel batch stats
    var = jnp.mean((o - mu) ** 2, axis=0, keepdims=True)
    ca_ref[...] = (o - mu) * jax.lax.rsqrt(var + _EPS)

    tot = jnp.sum(mom_ref[...], axis=0)                   # (1, 2) = [sum, sum_sq]
    lane = jax.lax.broadcasted_iota(jnp.int32, (1, 2), 1)
    s1 = jnp.sum(jnp.where(lane == 0, tot, 0.0))
    s2 = jnp.sum(jnp.where(lane == 1, tot, 0.0))
    smu = s1 / n_spatial_total
    svar = jnp.maximum(s2 / n_spatial_total - smu * smu, 0.0)
    sinv = jax.lax.rsqrt(svar + _EPS)
    stats_ref[...] = jnp.where(lane == 0, smu, sinv)      # [mean, inv_std]


def _fuse_kernel(stats_ref, x_ref, ca_ref, sa_ref, o_ref):
    """out = (sigmoid(ca + BN(sa)) + 1) * x on one lane-dense (1, C, ts) tile."""
    mu = stats_ref[0, 0]
    inv = stats_ref[0, 1]
    sa_n = (sa_ref[...] - mu) * inv                       # (1, 1, ts)
    att = jax.nn.sigmoid(ca_ref[...] + sa_n)              # (1, C, 1) + (1, 1, ts)
    o_ref[...] = (att + 1.0) * x_ref[...]


# ----------------------------- pallas_call wrappers -----------------------------

def _vmem_spec():
    return pl.BlockSpec(memory_space=pltpu.MemorySpace.VMEM)


def _pick_spatial_tile(S, C, budget_bytes=4 << 20):
    """Largest lane-dense (multiple-of-128) spatial tile within the VMEM budget."""
    if S % 128 != 0:
        return S                       # full rows (block dim == full dim is legal)
    fallback = None
    for cand in (16384, 8192, 4096, 2048, 1024, 512, 256, 128):
        if cand <= S and S % cand == 0:
            if fallback is None:
                fallback = cand
            if C * cand * 4 <= budget_bytes:
                return cand
    return fallback


def _spatial_branch(x_bcs, params, masks, H, W, d):
    B, C, S = x_bcs.shape
    Cr = params["conv1_w"].shape[0]
    Mo = d * W + d
    kernel = functools.partial(_spatial_kernel, H=H, W=W, d=d)
    return pl.pallas_call(
        kernel,
        out_shape=(jax.ShapeDtypeStruct((B, C, 1), jnp.float32),   # pooled
                   jax.ShapeDtypeStruct((B, 1, S), jnp.float32),   # raw sa
                   jax.ShapeDtypeStruct((B, 1, 2), jnp.float32)),  # moments
        grid=(B,),
        in_specs=[
            pl.BlockSpec((1, C, S), lambda b: (b, 0, 0)),
            pl.BlockSpec((Cr, C), lambda b: (0, 0)),
            pl.BlockSpec((Cr, 9 * Cr), lambda b: (0, 0)),
            pl.BlockSpec((1, 9 * Cr), lambda b: (0, 0)),
            pl.BlockSpec((9, S), lambda b: (0, 0)),
        ],
        out_specs=(pl.BlockSpec((1, C, 1), lambda b: (b, 0, 0)),
                   pl.BlockSpec((1, 1, S), lambda b: (b, 0, 0)),
                   pl.BlockSpec((1, 1, 2), lambda b: (b, 0, 0))),
        scratch_shapes=[pltpu.VMEM((Cr, S + 2 * Mo), jnp.float32),
                        pltpu.VMEM((9 * Cr, S), jnp.float32)],
        compiler_params=pltpu.CompilerParams(dimension_semantics=("parallel",)),
    )(x_bcs, params["conv1_w"], params["conv2_ws"], params["conv34_ws"], masks)


def _channel_branch(pooled_bc, moments, params, n_spatial_total):
    B, C = pooled_bc.shape
    kernel = functools.partial(_channel_kernel,
                               n_spatial_total=float(n_spatial_total))
    return pl.pallas_call(
        kernel,
        out_shape=(jax.ShapeDtypeStruct((B, C), jnp.float32),
                   jax.ShapeDtypeStruct((1, 2), jnp.float32)),
        in_specs=[_vmem_spec()] * 6,
        out_specs=(_vmem_spec(), _vmem_spec()),
    )(pooled_bc, params["l1_w_t"], params["l1_b"],
      params["l2_w_t"], params["l2_b"], moments)


def _fuse(x_bcs, ca_bc1, sa_b1s, stats):
    B, C, S = x_bcs.shape
    ts = _pick_spatial_tile(S, C)
    return pl.pallas_call(
        _fuse_kernel,
        out_shape=jax.ShapeDtypeStruct((B, C, S), jnp.float32),
        grid=(B, S // ts),
        in_specs=[
            pl.BlockSpec(memory_space=pltpu.MemorySpace.SMEM),       # BN(1) stats
            pl.BlockSpec((1, C, ts), lambda b, s: (b, 0, s)),        # x
            pl.BlockSpec((1, C, 1), lambda b, s: (b, 0, 0)),         # ca
            pl.BlockSpec((1, 1, ts), lambda b, s: (b, 0, s)),        # sa (raw)
        ],
        out_specs=pl.BlockSpec((1, C, ts), lambda b, s: (b, 0, s)),
        compiler_params=pltpu.CompilerParams(
            dimension_semantics=("parallel", "parallel")),
    )(stats, x_bcs, ca_bc1, sa_b1s)


# ------------------------------ glue (plain JAX) ------------------------------

def _tap_masks(H, W, d):
    """(9, H*W) validity mask per 3x3 dilated tap: 1 where the shifted read
    lands inside the (un-padded) image, 0 on the zero-padding ring / row wrap."""
    h = jnp.arange(H)[:, None]
    w = jnp.arange(W)[None, :]
    rows = []
    for ky in range(3):
        for kx in range(3):
            dy, dx = (ky - 1) * d, (kx - 1) * d
            valid = ((h + dy >= 0) & (h + dy < H) &
                     (w + dx >= 0) & (w + dx < W))
            rows.append(valid.reshape(1, H * W))
    return jnp.concatenate(rows, axis=0).astype(jnp.float32)


def bam_forward(x_nchw, params, dilation):
    """BAM forward: out = (sigmoid(channel_att + spatial_att) + 1) * x (NCHW)."""
    B, C, H, W = x_nchw.shape
    S = H * W
    x_bcs = x_nchw.reshape(B, C, S).astype(jnp.float32)
    masks = _tap_masks(H, W, dilation)

    # Fused spatial branch + global average pool (x read once here).
    pooled, sa_raw, moments = _spatial_branch(x_bcs, params, masks, H, W, dilation)

    # Tiny channel-branch MLP + BN, and the deferred global BN(1) stats of sa
    # reduced from the per-image partial moments.
    ca, sa_stats = _channel_branch(pooled.reshape(B, C), moments, params, B * S)

    # One lane-dense elementwise pass: BN(sa), sigmoid, +1, * x.
    out = _fuse(x_bcs, ca.reshape(B, C, 1), sa_raw, sa_stats)
    return out.reshape(B, C, H, W)


def init_bam_params(key, in_channel, reduction):
    """Deterministic synthetic parameters with the PyTorch module's shapes."""
    C = in_channel
    Cr = in_channel // reduction
    ks = jax.random.split(key, 8)
    n = lambda k, shape, s=0.1: s * jax.random.normal(k, shape, jnp.float32)
    return {
        "l1_w": n(ks[0], (Cr, C)),           # nn.Linear weight: (out, in)
        "l1_b": n(ks[1], (Cr,), 0.05),
        "l2_w": n(ks[2], (C, Cr)),
        "l2_b": n(ks[3], (C,), 0.05),
        "conv1_w": n(ks[4], (Cr, C, 1, 1)),  # nn.Conv2d weight: (out, in, kh, kw)
        "conv2_w": n(ks[5], (Cr, Cr, 3, 3)),
        "conv3_w": n(ks[6], (Cr, Cr, 3, 3)),
        "conv4_w": n(ks[7], (1, Cr, 1, 1)),
    }


def prepare_params(raw):
    """Reformat PyTorch-shaped weights into the layouts the kernels consume."""
    Cr, C = raw["conv1_w"].shape[:2]

    def tap_stacked(w):
        # (Cout, Cin, 3, 3) -> (Cout, ky, kx, Cin) -> (Cout, 9*Cin); row order
        # j*Cin + ci with j = 3*ky + kx matches the stacked-tap buffer.
        return jnp.transpose(w, (0, 2, 3, 1)).reshape(w.shape[0], 9 * w.shape[1])

    # Exact fold of the bias-free 1x1 conv4 into conv3 (no nonlinearity / BN
    # between them): w34[ci, ky, kx] = sum_co conv4[co] * conv3[co, ci, ky, kx].
    w34 = jnp.tensordot(raw["conv4_w"].reshape(-1), raw["conv3_w"],
                        axes=([0], [0]))                       # (Cin, 3, 3)
    w34_stacked = jnp.transpose(w34, (1, 2, 0)).reshape(1, 9 * Cr)

    return {
        "l1_w_t": raw["l1_w"].T,                  # (C, Cr)  f32 (tiny, exact)
        "l1_b": raw["l1_b"].reshape(1, Cr),
        "l2_w_t": raw["l2_w"].T,                  # (Cr, C)
        "l2_b": raw["l2_b"].reshape(1, C),
        "conv1_w": raw["conv1_w"].reshape(Cr, C).astype(jnp.bfloat16),
        "conv2_ws": tap_stacked(raw["conv2_w"]).astype(jnp.bfloat16),
        "conv34_ws": w34_stacked.astype(jnp.bfloat16),
    }


def _bam_reference(x, raw, d):
    """Pure-JAX reference of the PyTorch module (training-mode BatchNorm stats)."""
    hi = jax.lax.Precision.HIGHEST
    pooled = jnp.mean(x, axis=(2, 3))
    h = jnp.dot(pooled, raw["l1_w"].T, precision=hi) + raw["l1_b"]
    o = jnp.dot(h, raw["l2_w"].T, precision=hi) + raw["l2_b"]
    mu = jnp.mean(o, axis=0, keepdims=True)
    var = jnp.mean((o - mu) ** 2, axis=0, keepdims=True)
    ca = (o - mu) * jax.lax.rsqrt(var + _EPS)                        # (B, C)

    def conv(inp, w, dil, pad):
        return jax.lax.conv_general_dilated(
            inp, w, (1, 1), ((pad, pad), (pad, pad)),
            rhs_dilation=(dil, dil),
            dimension_numbers=("NCHW", "OIHW", "NCHW"), precision=hi)

    o1 = conv(x, raw["conv1_w"], 1, 0)
    o2 = conv(o1, raw["conv2_w"], d, d)
    o3 = conv(o2, raw["conv3_w"], d, d)
    o4 = conv(o3, raw["conv4_w"], 1, 0)
    smu = jnp.mean(o4)
    svar = jnp.mean((o4 - smu) ** 2)
    sa = (o4 - smu) * jax.lax.rsqrt(svar + _EPS)                     # (B, 1, H, W)
    return (jax.nn.sigmoid(ca[:, :, None, None] + sa) + 1.0) * x


if __name__ == "__main__":
    B, C, H, W = 2, 16, 16, 16
    dilation, reduction = 2, 4

    key = jax.random.PRNGKey(0)
    k_x, k_p = jax.random.split(key)
    x = jax.random.normal(k_x, (B, C, H, W), jnp.float32)
    raw = init_bam_params(k_p, C, reduction)
    params = prepare_params(raw)

    fwd = jax.jit(lambda xx: bam_forward(xx, params, dilation))
    out = jax.block_until_ready(fwd(x))
    assert out.shape == (B, C, H, W) and out.dtype == jnp.float32

    ref = jax.block_until_ready(_bam_reference(x, raw, dilation))
    max_err = float(jnp.max(jnp.abs(out - ref)))
    assert max_err < 2e-2, f"mismatch vs reference: max abs err {max_err}"
    print("KERNEL_OK")
</pallas_src>

<mosaic_0001>
module attributes {stable_mosaic.version = 11 : i64} {
  func.func @_spatial_kernel(%arg0: i32, %arg1: memref<1x16x256xf32, #tpu.memory_space<vmem>>, %arg2: memref<4x16xbf16, #tpu.memory_space<vmem>>, %arg3: memref<4x36xbf16, #tpu.memory_space<vmem>>, %arg4: memref<1x36xbf16, #tpu.memory_space<vmem>>, %arg5: memref<9x256xf32, #tpu.memory_space<vmem>>, %arg6: memref<1x16x1xf32, #tpu.memory_space<vmem>>, %arg7: memref<1x1x256xf32, #tpu.memory_space<vmem>>, %arg8: memref<1x1x2xf32, #tpu.memory_space<vmem>>, %arg9: memref<4x324xf32, #tpu.memory_space<vmem>>, %arg10: memref<36x256xf32, #tpu.memory_space<vmem>>) attributes {dimension_semantics = [#tpu.dimension_semantics<parallel>], iteration_bounds = array<i64: 2>, scalar_prefetch = 0 : i64, scratch_operands = 2 : i64, tpu.core_type = #tpu.core_type<tc>, window_params = [{transform_indices = @transform_0, window_bounds = array<i64: 1, 16, 256>}, {pipeline_mode = #tpu.pipeline_mode<synchronous>, transform_indices = @transform_1, window_bounds = array<i64: 4, 16>}, {pipeline_mode = #tpu.pipeline_mode<synchronous>, transform_indices = @transform_2, window_bounds = array<i64: 4, 36>}, {pipeline_mode = #tpu.pipeline_mode<synchronous>, transform_indices = @transform_3, window_bounds = array<i64: 1, 36>}, {pipeline_mode = #tpu.pipeline_mode<synchronous>, transform_indices = @transform_4, window_bounds = array<i64: 9, 256>}, {transform_indices = @transform_5, window_bounds = array<i64: 1, 16, 1>}, {transform_indices = @transform_6, window_bounds = array<i64: 1, 1, 256>}, {transform_indices = @transform_7, window_bounds = array<i64: 1, 1, 2>}]} {
    %c0 = arith.constant 0 : index
    %c0_0 = arith.constant 0 : index
    %c0_1 = arith.constant 0 : index
    %0 = vector.load %arg1[%c0, %c0_0, %c0_1] : memref<1x16x256xf32, #tpu.memory_space<vmem>>, vector<1x16x256xf32>
    %1 = vector.shape_cast %0 : vector<1x16x256xf32> to vector<16x256xf32>
    %cst = arith.constant dense<0.000000e+00> : vector<16xf32>
    %2 = vector.multi_reduction <add>, %1, %cst [1] : vector<16x256xf32> to vector<16xf32>
    %3 = vector.shape_cast %2 : vector<16xf32> to vector<16x1xf32>
    %cst_2 = arith.constant 2.560000e+02 : f32
    %4 = vector.broadcast %cst_2 : f32 to vector<16x1xf32>
    %5 = arith.divf %3, %4 : vector<16x1xf32>
    %c0_3 = arith.constant 0 : index
    %c0_4 = arith.constant 0 : index
    %c0_5 = arith.constant 0 : index
    %6 = vector.load %arg6[%c0_3, %c0_4, %c0_5] : memref<1x16x1xf32, #tpu.memory_space<vmem>>, vector<1x16x1xf32>
    %7 = vector.shape_cast %6 : vector<1x16x1xf32> to vector<16x1xf32>
    %8 = vector.shape_cast %5 : vector<16x1xf32> to vector<1x16x1xf32>
    tpu.vector_store %arg6[%c0_3, %c0_4, %c0_5], %8 {strides = array<i32>} : memref<1x16x1xf32, #tpu.memory_space<vmem>>, vector<1x16x1xf32>,
    %c0_6 = arith.constant 0 : index
    %c0_7 = arith.constant 0 : index
    %9 = vector.load %arg2[%c0_6, %c0_7] : memref<4x16xbf16, #tpu.memory_space<vmem>>, vector<4x16xbf16>
    %10 = arith.truncf %1 : vector<16x256xf32> to vector<16x256xbf16>
    %cst_8 = arith.constant dense<0.000000e+00> : vector<4x256xf32>
    %11 = tpu.matmul %9, %10, %cst_8 {dimension_numbers = #tpu.dot_dimension_numbers<[1], [0], [0], [1], [0, 0, 1, 1], [], []>} : vector<4x16xbf16>, vector<16x256xbf16>, vector<4x256xf32> -> vector<4x256xf32>
    %cst_9 = arith.constant 0.000000e+00 : f32
    %12 = vector.broadcast %cst_9 : f32 to vector<4x34xf32>
    %c0_10 = arith.constant 0 : index
    %c0_11 = arith.constant 0 : index
    %13 = vector.load %arg9[%c0_10, %c0_11] : memref<4x324xf32, #tpu.memory_space<vmem>>, vector<4x34xf32>
    tpu.vector_store %arg9[%c0_10, %c0_11], %12 {strides = array<i32>} : memref<4x324xf32, #tpu.memory_space<vmem>>, vector<4x34xf32>,
    %c0_12 = arith.constant 0 : index
    %c290 = arith.constant 290 : index
    %14 = vector.load %arg9[%c0_12, %c290] : memref<4x324xf32, #tpu.memory_space<vmem>>, vector<4x34xf32>
    tpu.vector_store %arg9[%c0_12, %c290], %12 {strides = array<i32>} : memref<4x324xf32, #tpu.memory_space<vmem>>, vector<4x34xf32>,
    %c0_13 = arith.constant 0 : index
    %c0_14 = arith.constant 0 : index
    %15 = vector.load %arg3[%c0_13, %c0_14] : memref<4x36xbf16, #tpu.memory_space<vmem>>, vector<4x36xbf16>
    %c0_15 = arith.constant 0 : index
    %c34 = arith.constant 34 : index
    %16 = vector.load %arg9[%c0_15, %c34] : memref<4x324xf32, #tpu.memory_space<vmem>>, vector<4x256xf32>
    tpu.vector_store %arg9[%c0_15, %c34], %11 {strides = array<i32>} : memref<4x324xf32, #tpu.memory_space<vmem>>, vector<4x256xf32>,
    %c0_16 = arith.constant 0 : index
    %c0_17 = arith.constant 0 : index
    %17 = vector.load %arg9[%c0_16, %c0_17] : memref<4x324xf32, #tpu.memory_space<vmem>>, vector<4x256xf32>
    %c0_18 = arith.constant 0 : index
    %c0_19 = arith.constant 0 : index
    %18 = vector.load %arg5[%c0_18, %c0_19] : memref<9x256xf32, #tpu.memory_space<vmem>>, vector<1x256xf32>
    %19 = vector.broadcast %18 : vector<1x256xf32> to vector<4x256xf32>
    %20 = arith.mulf %17, %19 : vector<4x256xf32>
    %c0_20 = arith.constant 0 : index
    %c0_21 = arith.constant 0 : index
    %21 = vector.load %arg10[%c0_20, %c0_21] : memref<36x256xf32, #tpu.memory_space<vmem>>, vector<4x256xf32>
    tpu.vector_store %arg10[%c0_20, %c0_21], %20 {strides = array<i32>} : memref<36x256xf32, #tpu.memory_space<vmem>>, vector<4x256xf32>,
    %c0_22 = arith.constant 0 : index
    %c2 = arith.constant 2 : index
    %22 = vector.load %arg9[%c0_22, %c2] : memref<4x324xf32, #tpu.memory_space<vmem>>, vector<4x256xf32>
    %c1 = arith.constant 1 : index
    %c0_23 = arith.constant 0 : index
    %23 = vector.load %arg5[%c1, %c0_23] : memref<9x256xf32, #tpu.memory_space<vmem>>, vector<1x256xf32>
    %24 = vector.broadcast %23 : vector<1x256xf32> to vector<4x256xf32>
    %25 = arith.mulf %22, %24 : vector<4x256xf32>
    %c4 = arith.constant 4 : index
    %c0_24 = arith.constant 0 : index
    %26 = vector.load %arg10[%c4, %c0_24] : memref<36x256xf32, #tpu.memory_space<vmem>>, vector<4x256xf32>
    tpu.vector_store %arg10[%c4, %c0_24], %25 {strides = array<i32>} : memref<36x256xf32, #tpu.memory_space<vmem>>, vector<4x256xf32>,
    %c0_25 = arith.constant 0 : index
    %c4_26 = arith.constant 4 : index
    %27 = vector.load %arg9[%c0_25, %c4_26] : memref<4x324xf32, #tpu.memory_space<vmem>>, vector<4x256xf32>
    %c2_27 = arith.constant 2 : index
    %c0_28 = arith.constant 0 : index
    %28 = vector.load %arg5[%c2_27, %c0_28] : memref<9x256xf32, #tpu.memory_space<vmem>>, vector<1x256xf32>
    %29 = vector.broadcast %28 : vector<1x256xf32> to vector<4x256xf32>
    %30 = arith.mulf %27, %29 : vector<4x256xf32>
    %c8 = arith.constant 8 : index
    %c0_29 = arith.constant 0 : index
    %31 = vector.load %arg10[%c8, %c0_29] : memref<36x256xf32, #tpu.memory_space<vmem>>, vector<4x256xf32>
    tpu.vector_store %arg10[%c8, %c0_29], %30 {strides = array<i32>} : memref<36x256xf32, #tpu.memory_space<vmem>>, vector<4x256xf32>,
    %c0_30 = arith.constant 0 : index
    %c32 = arith.constant 32 : index
    %32 = vector.load %arg9[%c0_30, %c32] : memref<4x324xf32, #tpu.memory_space<vmem>>, vector<4x256xf32>
    %c3 = arith.constant 3 : index
    %c0_31 = arith.constant 0 : index
    %33 = vector.load %arg5[%c3, %c0_31] : memref<9x256xf32, #tpu.memory_space<vmem>>, vector<1x256xf32>
    %34 = vector.broadcast %33 : vector<1x256xf32> to vector<4x256xf32>
    %35 = arith.mulf %32, %34 : vector<4x256xf32>
    %c12 = arith.constant 12 : index
    %c0_32 = arith.constant 0 : index
    %36 = vector.load %arg10[%c12, %c0_32] : memref<36x256xf32, #tpu.memory_space<vmem>>, vector<4x256xf32>
    tpu.vector_store %arg10[%c12, %c0_32], %35 {strides = array<i32>} : memref<36x256xf32, #tpu.memory_space<vmem>>, vector<4x256xf32>,
    %c0_33 = arith.constant 0 : index
    %c34_34 = arith.constant 34 : index
    %37 = vector.load %arg9[%c0_33, %c34_34] : memref<4x324xf32, #tpu.memory_space<vmem>>, vector<4x256xf32>
    %c4_35 = arith.constant 4 : index
    %c0_36 = arith.constant 0 : index
    %38 = vector.load %arg5[%c4_35, %c0_36] : memref<9x256xf32, #tpu.memory_space<vmem>>, vector<1x256xf32>
    %39 = vector.broadcast %38 : vector<1x256xf32> to vector<4x256xf32>
    %40 = arith.mulf %37, %39 : vector<4x256xf32>
    %c16 = arith.constant 16 : index
    %c0_37 = arith.constant 0 : index
    %41 = vector.load %arg10[%c16, %c0_37] : memref<36x256xf32, #tpu.memory_space<vmem>>, vector<4x256xf32>
    tpu.vector_store %arg10[%c16, %c0_37], %40 {strides = array<i32>} : memref<36x256xf32, #tpu.memory_space<vmem>>, vector<4x256xf32>,
    %c0_38 = arith.constant 0 : index
    %c36 = arith.constant 36 : index
    %42 = vector.load %arg9[%c0_38, %c36] : memref<4x324xf32, #tpu.memory_space<vmem>>, vector<4x256xf32>
    %c5 = arith.constant 5 : index
    %c0_39 = arith.constant 0 : index
    %43 = vector.load %arg5[%c5, %c0_39] : memref<9x256xf32, #tpu.memory_space<vmem>>, vector<1x256xf32>
    %44 = vector.broadcast %43 : vector<1x256xf32> to vector<4x256xf32>
    %45 = arith.mulf %42, %44 : vector<4x256xf32>
    %c20 = arith.constant 20 : index
    %c0_40 = arith.constant 0 : index
    %46 = vector.load %arg10[%c20, %c0_40] : memref<36x256xf32, #tpu.memory_space<vmem>>, vector<4x256xf32>
    tpu.vector_store %arg10[%c20, %c0_40], %45 {strides = array<i32>} : memref<36x256xf32, #tpu.memory_space<vmem>>, vector<4x256xf32>,
    %c0_41 = arith.constant 0 : index
    %c64 = arith.constant 64 : index
    %47 = vector.load %arg9[%c0_41, %c64] : memref<4x324xf32, #tpu.memory_space<vmem>>, vector<4x256xf32>
    %c6 = arith.constant 6 : index
    %c0_42 = arith.constant 0 : index
    %48 = vector.load %arg5[%c6, %c0_42] : memref<9x256xf32, #tpu.memory_space<vmem>>, vector<1x256xf32>
    %49 = vector.broadcast %48 : vector<1x256xf32> to vector<4x256xf32>
    %50 = arith.mulf %47, %49 : vector<4x256xf32>
    %c24 = arith.constant 24 : index
    %c0_43 = arith.constant 0 : index
    %51 = vector.load %arg10[%c24, %c0_43] : memref<36x256xf32, #tpu.memory_space<vmem>>, vector<4x256xf32>
    tpu.vector_store %arg10[%c24, %c0_43], %50 {strides = array<i32>} : memref<36x256xf32, #tpu.memory_space<vmem>>, vector<4x256xf32>,
    %c0_44 = arith.constant 0 : index
    %c66 = arith.constant 66 : index
    %52 = vector.load %arg9[%c0_44, %c66] : memref<4x324xf32, #tpu.memory_space<vmem>>, vector<4x256xf32>
    %c7 = arith.constant 7 : index
    %c0_45 = arith.constant 0 : index
    %53 = vector.load %arg5[%c7, %c0_45] : memref<9x256xf32, #tpu.memory_space<vmem>>, vector<1x256xf32>
    %54 = vector.broadcast %53 : vector<1x256xf32> to vector<4x256xf32>
    %55 = arith.mulf %52, %54 : vector<4x256xf32>
    %c28 = arith.constant 28 : index
    %c0_46 = arith.constant 0 : index
    %56 = vector.load %arg10[%c28, %c0_46] : memref<36x256xf32, #tpu.memory_space<vmem>>, vector<4x256xf32>
    tpu.vector_store %arg10[%c28, %c0_46], %55 {strides = array<i32>} : memref<36x256xf32, #tpu.memory_space<vmem>>, vector<4x256xf32>,
    %c0_47 = arith.constant 0 : index
    %c68 = arith.constant 68 : index
    %57 = vector.load %arg9[%c0_47, %c68] : memref<4x324xf32, #tpu.memory_space<vmem>>, vector<4x256xf32>
    %c8_48 = arith.constant 8 : index
    %c0_49 = arith.constant 0 : index
    %58 = vector.load %arg5[%c8_48, %c0_49] : memref<9x256xf32, #tpu.memory_space<vmem>>, vector<1x256xf32>
    %59 = vector.broadcast %58 : vector<1x256xf32> to vector<4x256xf32>
    %60 = arith.mulf %57, %59 : vector<4x256xf32>
    %c32_50 = arith.constant 32 : index
    %c0_51 = arith.constant 0 : index
    %61 = vector.load %arg10[%c32_50, %c0_51] : memref<36x256xf32, #tpu.memory_space<vmem>>, vector<4x256xf32>
    tpu.vector_store %arg10[%c32_50, %c0_51], %60 {strides = array<i32>} : memref<36x256xf32, #tpu.memory_space<vmem>>, vector<4x256xf32>,
    %c0_52 = arith.constant 0 : index
    %c0_53 = arith.constant 0 : index
    %62 = vector.load %arg10[%c0_52, %c0_53] : memref<36x256xf32, #tpu.memory_space<vmem>>, vector<36x256xf32>
    %63 = arith.truncf %62 : vector<36x256xf32> to vector<36x256xbf16>
    %cst_54 = arith.constant dense<0.000000e+00> : vector<4x256xf32>
    %64 = tpu.matmul %15, %63, %cst_54 {dimension_numbers = #tpu.dot_dimension_numbers<[1], [0], [0], [1], [0, 0, 1, 1], [], []>} : vector<4x36xbf16>, vector<36x256xbf16>, vector<4x256xf32> -> vector<4x256xf32>
    %c0_55 = arith.constant 0 : index
    %c0_56 = arith.constant 0 : index
    %65 = vector.load %arg4[%c0_55, %c0_56] : memref<1x36xbf16, #tpu.memory_space<vmem>>, vector<1x36xbf16>
    %c0_57 = arith.constant 0 : index
    %c34_58 = arith.constant 34 : index
    %66 = vector.load %arg9[%c0_57, %c34_58] : memref<4x324xf32, #tpu.memory_space<vmem>>, vector<4x256xf32>
    tpu.vector_store %arg9[%c0_57, %c34_58], %64 {strides = array<i32>} : memref<4x324xf32, #tpu.memory_space<vmem>>, vector<4x256xf32>,
    %c0_59 = arith.constant 0 : index
    %c0_60 = arith.constant 0 : index
    %67 = vector.load %arg9[%c0_59, %c0_60] : memref<4x324xf32, #tpu.memory_space<vmem>>, vector<4x256xf32>
    %c0_61 = arith.constant 0 : index
    %c0_62 = arith.constant 0 : index
    %68 = vector.load %arg5[%c0_61, %c0_62] : memref<9x256xf32, #tpu.memory_space<vmem>>, vector<1x256xf32>
    %69 = vector.broadcast %68 : vector<1x256xf32> to vector<4x256xf32>
    %70 = arith.mulf %67, %69 : vector<4x256xf32>
    %c0_63 = arith.constant 0 : index
    %c0_64 = arith.constant 0 : index
    %71 = vector.load %arg10[%c0_63, %c0_64] : memref<36x256xf32, #tpu.memory_space<vmem>>, vector<4x256xf32>
    tpu.vector_store %arg10[%c0_63, %c0_64], %70 {strides = array<i32>} : memref<36x256xf32, #tpu.memory_space<vmem>>, vector<4x256xf32>,
    %c0_65 = arith.constant 0 : index
    %c2_66 = arith.constant 2 : index
    %72 = vector.load %arg9[%c0_65, %c2_66] : memref<4x324xf32, #tpu.memory_space<vmem>>, vector<4x256xf32>
    %c1_67 = arith.constant 1 : index
    %c0_68 = arith.constant 0 : index
    %73 = vector.load %arg5[%c1_67, %c0_68] : memref<9x256xf32, #tpu.memory_space<vmem>>, vector<1x256xf32>
    %74 = vector.broadcast %73 : vector<1x256xf32> to vector<4x256xf32>
    %75 = arith.mulf %72, %74 : vector<4x256xf32>
    %c4_69 = arith.constant 4 : index
    %c0_70 = arith.constant 0 : index
    %76 = vector.load %arg10[%c4_69, %c0_70] : memref<36x256xf32, #tpu.memory_space<vmem>>, vector<4x256xf32>
    tpu.vector_store %arg10[%c4_69, %c0_70], %75 {strides = array<i32>} : memref<36x256xf32, #tpu.memory_space<vmem>>, vector<4x256xf32>,
    %c0_71 = arith.constant 0 : index
    %c4_72 = arith.constant 4 : index
    %77 = vector.load %arg9[%c0_71, %c4_72] : memref<4x324xf32, #tpu.memory_space<vmem>>, vector<4x256xf32>
    %c2_73 = arith.constant 2 : index
    %c0_74 = arith.constant 0 : index
    %78 = vector.load %arg5[%c2_73, %c0_74] : memref<9x256xf32, #tpu.memory_space<vmem>>, vector<1x256xf32>
    %79 = vector.broadcast %78 : vector<1x256xf32> to vector<4x256xf32>
    %80 = arith.mulf %77, %79 : vector<4x256xf32>
    %c8_75 = arith.constant 8 : index
    %c0_76 = arith.constant 0 : index
    %81 = vector.load %arg10[%c8_75, %c0_76] : memref<36x256xf32, #tpu.memory_space<vmem>>, vector<4x256xf32>
    tpu.vector_store %arg10[%c8_75, %c0_76], %80 {strides = array<i32>} : memref<36x256xf32, #tpu.memory_space<vmem>>, vector<4x256xf32>,
    %c0_77 = arith.constant 0 : index
    %c32_78 = arith.constant 32 : index
    %82 = vector.load %arg9[%c0_77, %c32_78] : memref<4x324xf32, #tpu.memory_space<vmem>>, vector<4x256xf32>
    %c3_79 = arith.constant 3 : index
    %c0_80 = arith.constant 0 : index
    %83 = vector.load %arg5[%c3_79, %c0_80] : memref<9x256xf32, #tpu.memory_space<vmem>>, vector<1x256xf32>
    %84 = vector.broadcast %83 : vector<1x256xf32> to vector<4x256xf32>
    %85 = arith.mulf %82, %84 : vector<4x256xf32>
    %c12_81 = arith.constant 12 : index
    %c0_82 = arith.constant 0 : index
    %86 = vector.load %arg10[%c12_81, %c0_82] : memref<36x256xf32, #tpu.memory_space<vmem>>, vector<4x256xf32>
    tpu.vector_store %arg10[%c12_81, %c0_82], %85 {strides = array<i32>} : memref<36x256xf32, #tpu.memory_space<vmem>>, vector<4x256xf32>,
    %c0_83 = arith.constant 0 : index
    %c34_84 = arith.constant 34 : index
    %87 = vector.load %arg9[%c0_83, %c34_84] : memref<4x324xf32, #tpu.memory_space<vmem>>, vector<4x256xf32>
    %c4_85 = arith.constant 4 : index
    %c0_86 = arith.constant 0 : index
    %88 = vector.load %arg5[%c4_85, %c0_86] : memref<9x256xf32, #tpu.memory_space<vmem>>, vector<1x256xf32>
    %89 = vector.broadcast %88 : vector<1x256xf32> to vector<4x256xf32>
    %90 = arith.mulf %87, %89 : vector<4x256xf32>
    %c16_87 = arith.constant 16 : index
    %c0_88 = arith.constant 0 : index
    %91 = vector.load %arg10[%c16_87, %c0_88] : memref<36x256xf32, #tpu.memory_space<vmem>>, vector<4x256xf32>
    tpu.vector_store %arg10[%c16_87, %c0_88], %90 {strides = array<i32>} : memref<36x256xf32, #tpu.memory_space<vmem>>, vector<4x256xf32>,
    %c0_89 = arith.constant 0 : index
    %c36_90 = arith.constant 36 : index
    %92 = vector.load %arg9[%c0_89, %c36_90] : memref<4x324xf32, #tpu.memory_space<vmem>>, vector<4x256xf32>
    %c5_91 = arith.constant 5 : index
    %c0_92 = arith.constant 0 : index
    %93 = vector.load %arg5[%c5_91, %c0_92] : memref<9x256xf32, #tpu.memory_space<vmem>>, vector<1x256xf32>
    %94 = vector.broadcast %93 : vector<1x256xf32> to vector<4x256xf32>
    %95 = arith.mulf %92, %94 : vector<4x256xf32>
    %c20_93 = arith.constant 20 : index
    %c0_94 = arith.constant 0 : index
    %96 = vector.load %arg10[%c20_93, %c0_94] : memref<36x256xf32, #tpu.memory_space<vmem>>, vector<4x256xf32>
    tpu.vector_store %arg10[%c20_93, %c0_94], %95 {strides = array<i32>} : memref<36x256xf32, #tpu.memory_space<vmem>>, vector<4x256xf32>,
    %c0_95 = arith.constant 0 : index
    %c64_96 = arith.constant 64 : index
    %97 = vector.load %arg9[%c0_95, %c64_96] : memref<4x324xf32, #tpu.memory_space<vmem>>, vector<4x256xf32>
    %c6_97 = arith.constant 6 : index
    %c0_98 = arith.constant 0 : index
    %98 = vector.load %arg5[%c6_97, %c0_98] : memref<9x256xf32, #tpu.memory_space<vmem>>, vector<1x256xf32>
    %99 = vector.broadcast %98 : vector<1x256xf32> to vector<4x256xf32>
    %100 = arith.mulf %97, %99 : vector<4x256xf32>
    %c24_99 = arith.constant 24 : index
    %c0_100 = arith.constant 0 : index
    %101 = vector.load %arg10[%c24_99, %c0_100] : memref<36x256xf32, #tpu.memory_space<vmem>>, vector<4x256xf32>
    tpu.vector_store %arg10[%c24_99, %c0_100], %100 {strides = array<i32>} : memref<36x256xf32, #tpu.memory_space<vmem>>, vector<4x256xf32>,
    %c0_101 = arith.constant 0 : index
    %c66_102 = arith.constant 66 : index
    %102 = vector.load %arg9[%c0_101, %c66_102] : memref<4x324xf32, #tpu.memory_space<vmem>>, vector<4x256xf32>
    %c7_103 = arith.constant 7 : index
    %c0_104 = arith.constant 0 : index
    %103 = vector.load %arg5[%c7_103, %c0_104] : memref<9x256xf32, #tpu.memory_space<vmem>>, vector<1x256xf32>
    %104 = vector.broadcast %103 : vector<1x256xf32> to vector<4x256xf32>
    %105 = arith.mulf %102, %104 : vector<4x256xf32>
    %c28_105 = arith.constant 28 : index
    %c0_106 = arith.constant 0 : index
    %106 = vector.load %arg10[%c28_105, %c0_106] : memref<36x256xf32, #tpu.memory_space<vmem>>, vector<4x256xf32>
    tpu.vector_store %arg10[%c28_105, %c0_106], %105 {strides = array<i32>} : memref<36x256xf32, #tpu.memory_space<vmem>>, vector<4x256xf32>,
    %c0_107 = arith.constant 0 : index
    %c68_108 = arith.constant 68 : index
    %107 = vector.load %arg9[%c0_107, %c68_108] : memref<4x324xf32, #tpu.memory_space<vmem>>, vector<4x256xf32>
    %c8_109 = arith.constant 8 : index
    %c0_110 = arith.constant 0 : index
    %108 = vector.load %arg5[%c8_109, %c0_110] : memref<9x256xf32, #tpu.memory_space<vmem>>, vector<1x256xf32>
    %109 = vector.broadcast %108 : vector<1x256xf32> to vector<4x256xf32>
    %110 = arith.mulf %107, %109 : vector<4x256xf32>
    %c32_111 = arith.constant 32 : index
    %c0_112 = arith.constant 0 : index
    %111 = vector.load %arg10[%c32_111, %c0_112] : memref<36x256xf32, #tpu.memory_space<vmem>>, vector<4x256xf32>
    tpu.vector_store %arg10[%c32_111, %c0_112], %110 {strides = array<i32>} : memref<36x256xf32, #tpu.memory_space<vmem>>, vector<4x256xf32>,
    %c0_113 = arith.constant 0 : index
    %c0_114 = arith.constant 0 : index
    %112 = vector.load %arg10[%c0_113, %c0_114] : memref<36x256xf32, #tpu.memory_space<vmem>>, vector<36x256xf32>
    %113 = arith.truncf %112 : vector<36x256xf32> to vector<36x256xbf16>
    %cst_115 = arith.constant dense<0.000000e+00> : vector<1x256xf32>
    %114 = tpu.matmul %65, %113, %cst_115 {dimension_numbers = #tpu.dot_dimension_numbers<[1], [0], [0], [1], [0, 0, 1, 1], [], []>} : vector<1x36xbf16>, vector<36x256xbf16>, vector<1x256xf32> -> vector<1x256xf32>
    %c0_116 = arith.constant 0 : index
    %c0_117 = arith.constant 0 : index
    %c0_118 = arith.constant 0 : index
    %115 = vector.load %arg7[%c0_116, %c0_117, %c0_118] : memref<1x1x256xf32, #tpu.memory_space<vmem>>, vector<1x1x256xf32>
    %116 = vector.shape_cast %115 : vector<1x1x256xf32> to vector<1x256xf32>
    %117 = vector.shape_cast %114 : vector<1x256xf32> to vector<1x1x256xf32>
    tpu.vector_store %arg7[%c0_116, %c0_117, %c0_118], %117 {strides = array<i32>} : memref<1x1x256xf32, #tpu.memory_space<vmem>>, vector<1x1x256xf32>,
    %118 = vector.shape_cast %114 : vector<1x256xf32> to vector<1x1x256xf32>
    %cst_119 = arith.constant dense<0.000000e+00> : vector<1xf32>
    %119 = vector.multi_reduction <add>, %118, %cst_119 [1, 2] : vector<1x1x256xf32> to vector<1xf32>
    %120 = vector.shape_cast %119 : vector<1xf32> to vector<1x1x1xf32>
    %121 = vector.extract %120[0, 0, 0] : f32 from vector<1x1x1xf32>
    %122 = arith.mulf %114, %114 : vector<1x256xf32>
    %123 = vector.shape_cast %122 : vector<1x256xf32> to vector<1x1x256xf32>
    %cst_120 = arith.constant dense<0.000000e+00> : vector<1xf32>
    %124 = vector.multi_reduction <add>, %123, %cst_120 [1, 2] : vector<1x1x256xf32> to vector<1xf32>
    %125 = vector.shape_cast %124 : vector<1xf32> to vector<1x1x1xf32>
    %126 = vector.extract %125[0, 0, 0] : f32 from vector<1x1x1xf32>
    %127 = tpu.iota {dimensions = array<i32: 2>} : vector<1x1x2xi32>
    %c0_i32 = arith.constant 0 : i32
    %128 = vector.broadcast %c0_i32 : i32 to vector<1x1x2xi32>
    %129 = arith.cmpi eq, %127, %128 : vector<1x1x2xi32>
    %130 = vector.broadcast %121 : f32 to vector<1x1x2xf32>
    %131 = vector.broadcast %126 : f32 to vector<1x1x2xf32>
    %132 = arith.select %129, %130, %131 : vector<1x1x2xi1>, vector<1x1x2xf32>
    %c0_121 = arith.constant 0 : index
    %c0_122 = arith.constant 0 : index
    %c0_123 = arith.constant 0 : index
    %133 = vector.load %arg8[%c0_121, %c0_122, %c0_123] : memref<1x1x2xf32, #tpu.memory_space<vmem>>, vector<1x1x2xf32>
    tpu.vector_store %arg8[%c0_121, %c0_122, %c0_123], %132 {strides = array<i32>} : memref<1x1x2xf32, #tpu.memory_space<vmem>>, vector<1x1x2xf32>,
    return
  }
  func.func @transform_0(%arg0: i32) -> (i32, i32, i32) {
    %c0_i32 = arith.constant 0 : i32
    %c0_i32_0 = arith.constant 0 : i32
    %c0_i32_1 = arith.constant 0 : i32
    return %arg0, %c0_i32, %c0_i32_0 : i32, i32, i32
  }
  func.func @transform_1(%arg0: i32) -> (i32, i32) {
    %c0_i32 = arith.constant 0 : i32
    %c0_i32_0 = arith.constant 0 : i32
    %c0_i32_1 = arith.constant 0 : i32
    return %c0_i32, %c0_i32_0 : i32, i32
  }
  func.func @transform_2(%arg0: i32) -> (i32, i32) {
    %c0_i32 = arith.constant 0 : i32
    %c0_i32_0 = arith.constant 0 : i32
    %c0_i32_1 = arith.constant 0 : i32
    return %c0_i32, %c0_i32_0 : i32, i32
  }
  func.func @transform_3(%arg0: i32) -> (i32, i32) {
    %c0_i32 = arith.constant 0 : i32
    %c0_i32_0 = arith.constant 0 : i32
    %c0_i32_1 = arith.constant 0 : i32
    return %c0_i32, %c0_i32_0 : i32, i32
  }
  func.func @transform_4(%arg0: i32) -> (i32, i32) {
    %c0_i32 = arith.constant 0 : i32
    %c0_i32_0 = arith.constant 0 : i32
    %c0_i32_1 = arith.constant 0 : i32
    return %c0_i32, %c0_i32_0 : i32, i32
  }
  func.func @transform_5(%arg0: i32) -> (i32, i32, i32) {
    %c0_i32 = arith.constant 0 : i32
    %c0_i32_0 = arith.constant 0 : i32
    %c0_i32_1 = arith.constant 0 : i32
    return %arg0, %c0_i32, %c0_i32_0 : i32, i32, i32
  }
  func.func @transform_6(%arg0: i32) -> (i32, i32, i32) {
    %c0_i32 = arith.constant 0 : i32
    %c0_i32_0 = arith.constant 0 : i32
    %c0_i32_1 = arith.constant 0 : i32
    return %arg0, %c0_i32, %c0_i32_0 : i32, i32, i32
  }
  func.func @transform_7(%arg0: i32) -> (i32, i32, i32) {
    %c0_i32 = arith.constant 0 : i32
    %c0_i32_0 = arith.constant 0 : i32
    %c0_i32_1 = arith.constant 0 : i32
    return %arg0, %c0_i32, %c0_i32_0 : i32, i32, i32
  }
}

module attributes {stable_mosaic.version = 11 : i64} {
  func.func @_channel_kernel(%arg0: memref<2x16xf32, #tpu.memory_space<vmem>>, %arg1: memref<16x4xf32, #tpu.memory_space<vmem>>, %arg2: memref<1x4xf32, #tpu.memory_space<vmem>>, %arg3: memref<4x16xf32, #tpu.memory_space<vmem>>, %arg4: memref<1x16xf32, #tpu.memory_space<vmem>>, %arg5: memref<2x1x2xf32, #tpu.memory_space<vmem>>, %arg6: memref<2x16xf32, #tpu.memory_space<vmem>>, %arg7: memref<1x2xf32, #tpu.memory_space<vmem>>) attributes {dimension_semantics = [], scalar_prefetch = 0 : i64, scratch_operands = 0 : i64, tpu.core_type = #tpu.core_type<tc>} {
    %c0 = arith.constant 0 : index
    %c0_0 = arith.constant 0 : index
    %0 = vector.load %arg0[%c0, %c0_0] : memref<2x16xf32, #tpu.memory_space<vmem>>, vector<2x16xf32>
    %c0_1 = arith.constant 0 : index
    %c0_2 = arith.constant 0 : index
    %1 = vector.load %arg1[%c0_1, %c0_2] : memref<16x4xf32, #tpu.memory_space<vmem>>, vector<16x4xf32>
    %cst = arith.constant dense<0.000000e+00> : vector<2x4xf32>
    %2 = tpu.matmul %0, %1, %cst {dimension_numbers = #tpu.dot_dimension_numbers<[1], [0], [0], [1], [0, 0, 1, 1], [], []>} : vector<2x16xf32>, vector<16x4xf32>, vector<2x4xf32> -> vector<2x4xf32>
    %c0_3 = arith.constant 0 : index
    %c0_4 = arith.constant 0 : index
    %3 = vector.load %arg2[%c0_3, %c0_4] : memref<1x4xf32, #tpu.memory_space<vmem>>, vector<1x4xf32>
    %4 = vector.broadcast %3 : vector<1x4xf32> to vector<2x4xf32>
    %5 = arith.addf %2, %4 : vector<2x4xf32>
    %c0_5 = arith.constant 0 : index
    %c0_6 = arith.constant 0 : index
    %6 = vector.load %arg3[%c0_5, %c0_6] : memref<4x16xf32, #tpu.memory_space<vmem>>, vector<4x16xf32>
    %cst_7 = arith.constant dense<0.000000e+00> : vector<2x16xf32>
    %7 = tpu.matmul %5, %6, %cst_7 {dimension_numbers = #tpu.dot_dimension_numbers<[1], [0], [0], [1], [0, 0, 1, 1], [], []>} : vector<2x4xf32>, vector<4x16xf32>, vector<2x16xf32> -> vector<2x16xf32>
    %c0_8 = arith.constant 0 : index
    %c0_9 = arith.constant 0 : index
    %8 = vector.load %arg4[%c0_8, %c0_9] : memref<1x16xf32, #tpu.memory_space<vmem>>, vector<1x16xf32>
    %9 = vector.broadcast %8 : vector<1x16xf32> to vector<2x16xf32>
    %10 = arith.addf %7, %9 : vector<2x16xf32>
    %cst_10 = arith.constant dense<0.000000e+00> : vector<16xf32>
    %11 = vector.multi_reduction <add>, %10, %cst_10 [0] : vector<2x16xf32> to vector<16xf32>
    %12 = vector.shape_cast %11 : vector<16xf32> to vector<1x16xf32>
    %cst_11 = arith.constant 2.000000e+00 : f32
    %13 = vector.broadcast %cst_11 : f32 to vector<1x16xf32>
    %14 = arith.divf %12, %13 : vector<1x16xf32>
    %15 = vector.broadcast %14 : vector<1x16xf32> to vector<2x16xf32>
    %16 = arith.subf %10, %15 : vector<2x16xf32>
    %17 = arith.mulf %16, %16 : vector<2x16xf32>
    %cst_12 = arith.constant dense<0.000000e+00> : vector<16xf32>
    %18 = vector.multi_reduction <add>, %17, %cst_12 [0] : vector<2x16xf32> to vector<16xf32>
    %19 = vector.shape_cast %18 : vector<16xf32> to vector<1x16xf32>
    %cst_13 = arith.constant 2.000000e+00 : f32
    %20 = vector.broadcast %cst_13 : f32 to vector<1x16xf32>
    %21 = arith.divf %19, %20 : vector<1x16xf32>
    %22 = vector.broadcast %14 : vector<1x16xf32> to vector<2x16xf32>
    %23 = arith.subf %10, %22 : vector<2x16xf32>
    %cst_14 = arith.constant 9.99999974E-6 : f32
    %24 = vector.broadcast %cst_14 : f32 to vector<1x16xf32>
    %25 = arith.addf %21, %24 : vector<1x16xf32>
    %26 = math.rsqrt %25 : vector<1x16xf32>
    %27 = vector.broadcast %26 : vector<1x16xf32> to vector<2x16xf32>
    %28 = arith.mulf %23, %27 : vector<2x16xf32>
    %c0_15 = arith.constant 0 : index
    %c0_16 = arith.constant 0 : index
    %29 = vector.load %arg6[%c0_15, %c0_16] : memref<2x16xf32, #tpu.memory_space<vmem>>, vector<2x16xf32>
    tpu.vector_store %arg6[%c0_15, %c0_16], %28 {strides = array<i32>} : memref<2x16xf32, #tpu.memory_space<vmem>>, vector<2x16xf32>,
    %c0_17 = arith.constant 0 : index
    %c0_18 = arith.constant 0 : index
    %c0_19 = arith.constant 0 : index
    %30 = vector.load %arg5[%c0_17, %c0_18, %c0_19] : memref<2x1x2xf32, #tpu.memory_space<vmem>>, vector<2x1x2xf32>
    %cst_20 = arith.constant dense<0.000000e+00> : vector<1x2xf32>
    %31 = vector.multi_reduction <add>, %30, %cst_20 [0] : vector<2x1x2xf32> to vector<1x2xf32>
    %32 = tpu.iota {dimensions = array<i32: 1>} : vector<1x2xi32>
    %c0_i32 = arith.constant 0 : i32
    %33 = vector.broadcast %c0_i32 : i32 to vector<1x2xi32>
    %34 = arith.cmpi eq, %32, %33 : vector<1x2xi32>
    %cst_21 = arith.constant 0.000000e+00 : f32
    %35 = vector.broadcast %cst_21 : f32 to vector<1x2xf32>
    %36 = arith.select %34, %31, %35 : vector<1x2xi1>, vector<1x2xf32>
    %37 = vector.shape_cast %36 : vector<1x2xf32> to vector<1x1x2xf32>
    %cst_22 = arith.constant dense<0.000000e+00> : vector<1xf32>
    %38 = vector.multi_reduction <add>, %37, %cst_22 [1, 2] : vector<1x1x2xf32> to vector<1xf32>
    %39 = vector.shape_cast %38 : vector<1xf32> to vector<1x1x1xf32>
    %40 = vector.extract %39[0, 0, 0] : f32 from vector<1x1x1xf32>
    %c1_i32 = arith.constant 1 : i32
    %41 = vector.broadcast %c1_i32 : i32 to vector<1x2xi32>
    %42 = arith.cmpi eq, %32, %41 : vector<1x2xi32>
    %cst_23 = arith.constant 0.000000e+00 : f32
    %43 = vector.broadcast %cst_23 : f32 to vector<1x2xf32>
    %44 = arith.select %42, %31, %43 : vector<1x2xi1>, vector<1x2xf32>
    %45 = vector.shape_cast %44 : vector<1x2xf32> to vector<1x1x2xf32>
    %cst_24 = arith.constant dense<0.000000e+00> : vector<1xf32>
    %46 = vector.multi_reduction <add>, %45, %cst_24 [1, 2] : vector<1x1x2xf32> to vector<1xf32>
    %47 = vector.shape_cast %46 : vector<1xf32> to vector<1x1x1xf32>
    %48 = vector.extract %47[0, 0, 0] : f32 from vector<1x1x1xf32>
    %cst_25 = arith.constant 5.120000e+02 : f32
    %49 = arith.divf %40, %cst_25 : f32
    %cst_26 = arith.constant 5.120000e+02 : f32
    %50 = arith.divf %48, %cst_26 : f32
    %51 = arith.mulf %49, %49 : f32
    %52 = arith.subf %50, %51 : f32
    %cst_27 = arith.constant 0.000000e+00 : f32
    %53 = arith.maximumf %52, %cst_27 : f32
    %cst_28 = arith.constant 9.99999974E-6 : f32
    %54 = arith.addf %53, %cst_28 : f32
    %55 = math.rsqrt %54 : f32
    %c0_i32_29 = arith.constant 0 : i32
    %56 = vector.broadcast %c0_i32_29 : i32 to vector<1x2xi32>
    %57 = arith.cmpi eq, %32, %56 : vector<1x2xi32>
    %58 = vector.broadcast %49 : f32 to vector<1x2xf32>
    %59 = vector.broadcast %55 : f32 to vector<1x2xf32>
    %60 = arith.select %57, %58, %59 : vector<1x2xi1>, vector<1x2xf32>
    %c0_30 = arith.constant 0 : index
    %c0_31 = arith.constant 0 : index
    %61 = vector.load %arg7[%c0_30, %c0_31] : memref<1x2xf32, #tpu.memory_space<vmem>>, vector<1x2xf32>
    tpu.vector_store %arg7[%c0_30, %c0_31], %60 {strides = array<i32>} : memref<1x2xf32, #tpu.memory_space<vmem>>, vector<1x2xf32>,
    return
  }
}

module attributes {stable_mosaic.version = 11 : i64} {
  func.func @_fuse_kernel(%arg0: i32, %arg1: i32, %arg2: memref<1x2xf32, #tpu.memory_space<smem>>, %arg3: memref<1x16x256xf32, #tpu.memory_space<vmem>>, %arg4: memref<1x16x1xf32, #tpu.memory_space<vmem>>, %arg5: memref<1x1x256xf32, #tpu.memory_space<vmem>>, %arg6: memref<1x16x256xf32, #tpu.memory_space<vmem>>) attributes {dimension_semantics = [#tpu.dimension_semantics<parallel>, #tpu.dimension_semantics<parallel>], iteration_bounds = array<i64: 2, 1>, scalar_prefetch = 0 : i64, scratch_operands = 0 : i64, tpu.core_type = #tpu.core_type<tc>, window_params = [{transform_indices = @transform_0, window_bounds = array<i64: 1, 2>}, {transform_indices = @transform_1, window_bounds = array<i64: 1, 16, 256>}, {transform_indices = @transform_2, window_bounds = array<i64: 1, 16, 1>}, {transform_indices = @transform_3, window_bounds = array<i64: 1, 1, 256>}, {transform_indices = @transform_4, window_bounds = array<i64: 1, 16, 256>}]} {
    %c0 = arith.constant 0 : index
    %c0_0 = arith.constant 0 : index
    %0 = memref.load %arg2[%c0, %c0_0] : memref<1x2xf32, #tpu.memory_space<smem>>
    %c0_1 = arith.constant 0 : index
    %c1 = arith.constant 1 : index
    %1 = memref.load %arg2[%c0_1, %c1] : memref<1x2xf32, #tpu.memory_space<smem>>
    %c0_2 = arith.constant 0 : index
    %c0_3 = arith.constant 0 : index
    %c0_4 = arith.constant 0 : index
    %2 = vector.load %arg5[%c0_2, %c0_3, %c0_4] : memref<1x1x256xf32, #tpu.memory_space<vmem>>, vector<1x1x256xf32>
    %3 = vector.broadcast %0 : f32 to vector<1x1x256xf32>
    %4 = arith.subf %2, %3 : vector<1x1x256xf32>
    %5 = vector.broadcast %1 : f32 to vector<1x1x256xf32>
    %6 = arith.mulf %4, %5 : vector<1x1x256xf32>
    %c0_5 = arith.constant 0 : index
    %c0_6 = arith.constant 0 : index
    %c0_7 = arith.constant 0 : index
    %7 = vector.load %arg4[%c0_5, %c0_6, %c0_7] : memref<1x16x1xf32, #tpu.memory_space<vmem>>, vector<1x16x1xf32>
    %8 = vector.broadcast %7 : vector<1x16x1xf32> to vector<1x16x256xf32>
    %9 = vector.broadcast %6 : vector<1x1x256xf32> to vector<1x16x256xf32>
    %10 = arith.addf %8, %9 : vector<1x16x256xf32>
    %11 = arith.negf %10 : vector<1x16x256xf32>
    %12 = math.exp %11 : vector<1x16x256xf32>
    %cst = arith.constant 1.000000e+00 : f32
    %13 = vector.broadcast %cst : f32 to vector<1x16x256xf32>
    %14 = arith.addf %13, %12 : vector<1x16x256xf32>
    %15 = arith.divf %13, %14 : vector<1x16x256xf32>
    %cst_8 = arith.constant 1.000000e+00 : f32
    %16 = vector.broadcast %cst_8 : f32 to vector<1x16x256xf32>
    %17 = arith.addf %15, %16 : vector<1x16x256xf32>
    %c0_9 = arith.constant 0 : index
    %c0_10 = arith.constant 0 : index
    %c0_11 = arith.constant 0 : index
    %18 = vector.load %arg3[%c0_9, %c0_10, %c0_11] : memref<1x16x256xf32, #tpu.memory_space<vmem>>, vector<1x16x256xf32>
    %19 = arith.mulf %17, %18 : vector<1x16x256xf32>
    %c0_12 = arith.constant 0 : index
    %c0_13 = arith.constant 0 : index
    %c0_14 = arith.constant 0 : index
    %20 = vector.load %arg6[%c0_12, %c0_13, %c0_14] : memref<1x16x256xf32, #tpu.memory_space<vmem>>, vector<1x16x256xf32>
    tpu.vector_store %arg6[%c0_12, %c0_13, %c0_14], %19 {strides = array<i32>} : memref<1x16x256xf32, #tpu.memory_space<vmem>>, vector<1x16x256xf32>,
    return
  }
  func.func @transform_0(%arg0: i32, %arg1: i32) -> (i32, i32) {
    %c0_i32 = arith.constant 0 : i32
    %c0_i32_0 = arith.constant 0 : i32
    %c0_i32_1 = arith.constant 0 : i32
    return %c0_i32, %c0_i32_0 : i32, i32
  }
  func.func @transform_1(%arg0: i32, %arg1: i32) -> (i32, i32, i32) {
    %c0_i32 = arith.constant 0 : i32
    %c0_i32_0 = arith.constant 0 : i32
    return %arg0, %c0_i32, %arg1 : i32, i32, i32
  }
  func.func @transform_2(%arg0: i32, %arg1: i32) -> (i32, i32, i32) {
    %c0_i32 = arith.constant 0 : i32
    %c0_i32_0 = arith.constant 0 : i32
    %c0_i32_1 = arith.constant 0 : i32
    return %arg0, %c0_i32, %c0_i32_0 : i32, i32, i32
  }
  func.func @transform_3(%arg0: i32, %arg1: i32) -> (i32, i32, i32) {
    %c0_i32 = arith.constant 0 : i32
    %c0_i32_0 = arith.constant 0 : i32
    return %arg0, %c0_i32, %arg1 : i32, i32, i32
  }
  func.func @transform_4(%arg0: i32, %arg1: i32) -> (i32, i32, i32) {
    %c0_i32 = arith.constant 0 : i32
    %c0_i32_0 = arith.constant 0 : i32
    return %arg0, %c0_i32, %arg1 : i32, i32, i32
  }
}

</mosaic_0001>

<llo_original>
// kernel: _lambda_.5
$region0: #{_lambda_.5}
  #allocation0 [shape = 'u32[]', space=smem, size = 0x4, offset = 0x4, fixed_abs, tag = 'smem constant byte address 0x4 - core index']
  #allocation1 [shape = 'u32[144,128]{1,0:T(1,128)}', space=vmem, size = 0x12000, scoped, tag = 'internal scratch']
  %s0 = inlined_call_operand.vmem [shape: f32[1,2], index: 0, kind: input, shape index: {}]
  %s1 = inlined_call_operand.vmem [shape: f32[2,16,256], index: 1, kind: input, shape index: {}]
  %s2 = inlined_call_operand.vmem [shape: f32[2,16,1], index: 2, kind: input, shape index: {}]
  %s3 = inlined_call_operand.vmem [shape: f32[2,1,256], index: 3, kind: input, shape index: {}]
  %s4 = inlined_call_operand.vmem [shape: f32[2,16,256], index: 4, kind: output, shape index: {}]
  %s5 = sld [smem:[#allocation0]]
  $region53: #{_lambda_.5} parent=0
    _
  %s7 = ssub.s32 1, %s5
  %s8 = scalar_select 0, %s7, %s5
  $region1: #{_lambda_.5} parent=0
    #allocation2 [shape = 'u8[512]{0}', space=smem, size = 0x200, scoped, tag = 'input window, operand 0, single buffered']
    #allocation3 [shape = 's32[2]{0}', space=sflag, size = 0x8, scoped, tag = 'scoped memory for _lambda_.5']
    %9 = vsyncpa [#allocation3], 0
    loop: start=0, step=1, limit=4
    $region2: #{_lambda_.5} parent=1 // loop_pre_header
      _
    $region3: #{_lambda_.5} parent=1 // loop_header
      %s11 = sphi 0, %s15
      %p12 = scmp.ge.s32.totalorder %s11, 4
      %s18 = sphi 0, %s30
      %s19 = sphi 0, %s26
      %s20 = sphi 0, %s18
      %s21 = sphi 0, %s19
      %s22 = sphi 0, %s20
      %s23 = sphi 0, %s21
      %s31 = sphi 0, %s31
      %s33 = sphi 0, %s31
      %s34 = sphi 0, %s33
      %s48 = sphi 0, %s34
      %s56 = sphi 0, %s58
      %s59 = sphi 0, %s56
      %s60 = sphi 0, %s59
      %s76 = sphi 0, %s60
      %s82 = sphi 0, %s84
      %s85 = sphi 0, %s82
      %s86 = sphi 0, %s85
      %s102 = sphi 0, %s86
      %s110 = sphi 0, %s112
      %s113 = sphi 0, %s110
      %s114 = sphi 0, %s113
      %s130 = sphi 0, %s114
      %s138 = sphi 0, %s140
      %s141 = sphi 0, %s138
      %s142 = sphi 0, %s141
      %s158 = sphi 0, %s142
    $region4: #{_lambda_.5} parent=1 // loop_header_branch
      %14 = sbr.rel (%p12) target = $region8
    $region5: #{_lambda_.5} parent=1 // loop_body
      %s16 = ssub.s32 %s11, 1
      %s17 = ssub.s32 %s11, 2
      %s24 = sadd.s32 1, %s19
      %p25 = scmp.ge.s32.totalorder %s24, 1
      %s26 = scalar_select %p25, 0, %s24
      %s27 = sadd.s32 1, %s18
      %s28 = scalar_select %p25, %s27, %s18
      %p29 = scmp.ge.s32.totalorder %s28, 2
      %s30 = scalar_select %p29, 0, %s28
      %s32 = sadd.s32 %s31, 1
      %p35 = scmp.eq.s32.totalorder %s11, 1
      %p36 = scmp.ne.s32.totalorder %s31, %s33
      %p37 = scmp.eq.s32.totalorder %s11, 0
      %p38 = por %p36, %p37
      %p39 = scmp.ne.s32.totalorder %s31, %s33
      %p40 = scmp.eq.s32.totalorder %s16, 1
      %p41 = por %p39, %p40
      %p42 = scmp.ne.s32.totalorder %s33, %s34
      %p43 = scmp.eq.s32.totalorder %s16, 0
      %p44 = por %p42, %p43
      %p45 = scmp.ne.s32.totalorder %s33, %s34
      %p46 = scmp.eq.s32.totalorder %s17, 1
      %p47 = por %p45, %p46
      %p49 = scmp.ne.s32.totalorder %s34, %s48
      %p50 = scmp.eq.s32.totalorder %s17, 0
      %p51 = por %p49, %p50
      %s52 = ssub.s32 %s18, %s30
      %s53 = ssub.s32 %s19, %s26
      %s54 = sor.u32 %s52, %s53
      %p55 = scmp.eq.s32.totalorder %s54, 0
      %s57 = sadd.s32 %s56, 1
      %s58 = scalar_select %p55, %s56, %s57
      %p61 = pneg %p55
      %p62 = scmp.eq.s32.totalorder %s11, 1
      %p63 = por %p61, %p62
      %p64 = scmp.ne.s32.totalorder %s56, %s59
      %p65 = scmp.eq.s32.totalorder %s11, 0
      %p66 = por %p64, %p65
      %p67 = scmp.ne.s32.totalorder %s56, %s59
      %p68 = scmp.eq.s32.totalorder %s16, 1
      %p69 = por %p67, %p68
      %p70 = scmp.ne.s32.totalorder %s59, %s60
      %p71 = scmp.eq.s32.totalorder %s16, 0
      %p72 = por %p70, %p71
      %p73 = scmp.ne.s32.totalorder %s59, %s60
      %p74 = scmp.eq.s32.totalorder %s17, 1
      %p75 = por %p73, %p74
      %p77 = scmp.ne.s32.totalorder %s60, %s76
      %p78 = scmp.eq.s32.totalorder %s17, 0
      %p79 = por %p77, %p78
      %s80 = ssub.s32 %s18, %s30
      %p81 = scmp.eq.s32.totalorder %s80, 0
      %s83 = sadd.s32 %s82, 1
      %s84 = scalar_select %p81, %s82, %s83
      %p87 = pneg %p81
      %p88 = scmp.eq.s32.totalorder %s11, 1
      %p89 = por %p87, %p88
      %p90 = scmp.ne.s32.totalorder %s82, %s85
      %p91 = scmp.eq.s32.totalorder %s11, 0
      %p92 = por %p90, %p91
      %p93 = scmp.ne.s32.totalorder %s82, %s85
      %p94 = scmp.eq.s32.totalorder %s16, 1
      %p95 = por %p93, %p94
      %p96 = scmp.ne.s32.totalorder %s85, %s86
      %p97 = scmp.eq.s32.totalorder %s16, 0
      %p98 = por %p96, %p97
      %p99 = scmp.ne.s32.totalorder %s85, %s86
      %p100 = scmp.eq.s32.totalorder %s17, 1
      %p101 = por %p99, %p100
      %p103 = scmp.ne.s32.totalorder %s86, %s102
      %p104 = scmp.eq.s32.totalorder %s17, 0
      %p105 = por %p103, %p104
      %s106 = ssub.s32 %s18, %s30
      %s107 = ssub.s32 %s19, %s26
      %s108 = sor.u32 %s106, %s107
      %p109 = scmp.eq.s32.totalorder %s108, 0
      %s111 = sadd.s32 %s110, 1
      %s112 = scalar_select %p109, %s110, %s111
      %p115 = pneg %p109
      %p116 = scmp.eq.s32.totalorder %s11, 1
      %p117 = por %p115, %p116
      %p118 = scmp.ne.s32.totalorder %s110, %s113
      %p119 = scmp.eq.s32.totalorder %s11, 0
      %p120 = por %p118, %p119
      %p121 = scmp.ne.s32.totalorder %s110, %s113
      %p122 = scmp.eq.s32.totalorder %s16, 1
      %p123 = por %p121, %p122
      %p124 = scmp.ne.s32.totalorder %s113, %s114
      %p125 = scmp.eq.s32.totalorder %s16, 0
      %p126 = por %p124, %p125
      %p127 = scmp.ne.s32.totalorder %s113, %s114
      %p128 = scmp.eq.s32.totalorder %s17, 1
      %p129 = por %p127, %p128
      %p131 = scmp.ne.s32.totalorder %s114, %s130
      %p132 = scmp.eq.s32.totalorder %s17, 0
      %p133 = por %p131, %p132
      %s134 = ssub.s32 %s18, %s30
      %s135 = ssub.s32 %s19, %s26
      %s136 = sor.u32 %s134, %s135
      %p137 = scmp.eq.s32.totalorder %s136, 0
      %s139 = sadd.s32 %s138, 1
      %s140 = scalar_select %p137, %s138, %s139
      %p143 = pneg %p137
      %p144 = scmp.eq.s32.totalorder %s11, 1
      %p145 = por %p143, %p144
      %p146 = scmp.ne.s32.totalorder %s138, %s141
      %p147 = scmp.eq.s32.totalorder %s11, 0
      %p148 = por %p146, %p147
      %p149 = scmp.ne.s32.totalorder %s138, %s141
      %p150 = scmp.eq.s32.totalorder %s16, 1
      %p151 = por %p149, %p150
      %p152 = scmp.ne.s32.totalorder %s141, %s142
      %p153 = scmp.eq.s32.totalorder %s16, 0
      %p154 = por %p152, %p153
      %p155 = scmp.ne.s32.totalorder %s141, %s142
      %p156 = scmp.eq.s32.totalorder %s17, 1
      %p157 = por %p155, %p156
      %p159 = scmp.ne.s32.totalorder %s142, %s158
      %p160 = scmp.eq.s32.totalorder %s17, 0
      %p161 = por %p159, %p160
      %p162 = scmp.le.s32.totalorder 1, %s11
      %p163 = scmp.lt.s32.totalorder %s11, 3
      %p164 = pnand %p162, %p163
      %p165 = pneg %p164
      // Predicated region
      $region9: #{_lambda_.5} parent=5 // pred_check
        _
      $region10: #{_lambda_.5} parent=5 // pred_check_branch
        %167 = sbr.rel (%p164) target = $region12
      $region11: #{_lambda_.5} parent=5 // pred_region
        %s168 = ssub.s32 %s11, 1
        // Predicated region
        $region13: #{_lambda_.5} parent=11 // pred_check
          %p169 = pneg %p44
        $region14: #{_lambda_.5} parent=11 // pred_check_branch
          %171 = sbr.rel (%p169) target = $region16
        $region15: #{_lambda_.5} parent=11 // pred_region
          %s173 = ssub.s32 16, 16
          %174 = vsyncadd [#allocation3], %s173
          %s176 = sshll.u32 %s0, 4
          %s177 = int_to_ptr.vmem [resolvable:$true] %s176
          %179 = dma.vmem_to_smem %s177, 16, [#allocation2], [#allocation3]
        $region16: #{_lambda_.5} parent=11 // pred_fallthru
          _
      $region12: #{_lambda_.5} parent=5 // pred_fallthru
        _
      %p180 = scmp.lt.s32.totalorder %s11, 2
      // Predicated region
      $region17: #{_lambda_.5} parent=5 // pred_check
        %p181 = pneg %p180
      $region18: #{_lambda_.5} parent=5 // pred_check_branch
        %183 = sbr.rel (%p181) target = $region20
      $region19: #{_lambda_.5} parent=5 // pred_region
        // Predicated region
        $region21: #{_lambda_.5} parent=19 // pred_check
          %p184 = pneg %p66
        $region22: #{_lambda_.5} parent=19 // pred_check_branch
          %186 = sbr.rel (%p184) target = $region24
        $region23: #{_lambda_.5} parent=19 // pred_region
          %s187 = smul.u32 2, %s19
          %p188 = scmp.lt.s32.totalorder %s18, 1
          %s189 = scalar_select %p188, %s18, 1
          %p190 = scmp.lt.s32.totalorder %s187, 1
          %s191 = scalar_select %p190, %s187, 1
          %s192 = smul.addr %s189, 4
          %s193 = sadd.s32 %s191, %s192
          %s194 = smul.addr %s193, 8
          %s195 = scalar_lea.vmem %s1, %s194
          %s196 = smul.u32 2, %s19
        $region24: #{_lambda_.5} parent=19 // pred_fallthru
          _
        // Predicated region
        $region25: #{_lambda_.5} parent=19 // pred_check
          %p197 = pneg %p92
        $region26: #{_lambda_.5} parent=19 // pred_check_branch
          %199 = sbr.rel (%p197) target = $region28
        $region27: #{_lambda_.5} parent=19 // pred_region
          %p200 = scmp.lt.s32.totalorder %s18, 1
          %s201 = scalar_select %p200, %s18, 1
          %s202 = smul.addr %s201, 2
          %s203 = smul.addr %s202, 8
          %s204 = scalar_lea.vmem %s2, %s203
        $region28: #{_lambda_.5} parent=19 // pred_fallthru
          _
        // Predicated region
        $region29: #{_lambda_.5} parent=19 // pred_check
          %p205 = pneg %p120
        $region30: #{_lambda_.5} parent=19 // pred_check_branch
          %207 = sbr.rel (%p205) target = $region32
        $region31: #{_lambda_.5} parent=19 // pred_region
          %s208 = smul.u32 2, %s19
          %p209 = scmp.lt.s32.totalorder %s18, 1
          %s210 = scalar_select %p209, %s18, 1
          %p211 = scmp.lt.s32.totalorder %s208, 1
          %s212 = scalar_select %p211, %s208, 1
          %s213 = smul.addr %s210, 2
          %s214 = sadd.s32 %s212, %s213
          %s215 = scalar_lea.vmem %s3, %s214
          %s216 = smul.u32 2, %s19
        $region32: #{_lambda_.5} parent=19 // pred_fallthru
          _
      $region20: #{_lambda_.5} parent=5 // pred_fallthru
        _
      %p217 = scmp.le.s32.totalorder 1, %s11
      %p218 = scmp.lt.s32.totalorder %s11, 3
      %p219 = pnand %p217, %p218
      %p220 = pneg %p219
      // Predicated region
      $region33: #{_lambda_.5} parent=5 // pred_check
        _
      $region34: #{_lambda_.5} parent=5 // pred_check_branch
        %222 = sbr.rel (%p219) target = $region36
      $region35: #{_lambda_.5} parent=5 // pred_region
        %s223 = ssub.s32 %s11, 1
        // Predicated region
        $region37: #{_lambda_.5} parent=35 // pred_check
          %p224 = pneg %p44
        $region38: #{_lambda_.5} parent=35 // pred_check_branch
          %226 = sbr.rel (%p224) target = $region40
        $region39: #{_lambda_.5} parent=35 // pred_region
          %227 = dma.done [#allocation3], 16
        $region40: #{_lambda_.5} parent=35 // pred_fallthru
          _
        %228 = sfence
        %p229 = pneg %p44
        %p230 = pneg %p41
        %s231 = smul.u32 2, %s21
        %p232 = scmp.lt.s32.totalorder %s20, 1
        %s233 = scalar_select %p232, %s20, 1
        %p234 = scmp.lt.s32.totalorder %s231, 1
        %s235 = scalar_select %p234, %s231, 1
        %s236 = smul.addr %s233, 4
        %s237 = sadd.s32 %s235, %s236
        %s238 = smul.addr %s237, 8
        %s239 = scalar_lea.vmem %s1, %s238
        %p240 = pneg %p72
        %p241 = pneg %p69
        %p242 = scmp.lt.s32.totalorder %s20, 1
        %s243 = scalar_select %p242, %s20, 1
        %s244 = smul.addr %s243, 2
        %s245 = smul.addr %s244, 8
        %s246 = scalar_lea.vmem %s2, %s245
        %p247 = pneg %p98
        %p248 = pneg %p95
        %s249 = smul.u32 2, %s21
        %p250 = scmp.lt.s32.totalorder %s20, 1
        %s251 = scalar_select %p250, %s20, 1
        %p252 = scmp.lt.s32.totalorder %s249, 1
        %s253 = scalar_select %p252, %s249, 1
        %s254 = smul.addr %s251, 2
        %s255 = sadd.s32 %s253, %s254
        %s256 = scalar_lea.vmem %s3, %s255
        %p257 = pneg %p126
        %p258 = pneg %p123
        %p259 = pneg %p154
        %p260 = pneg %p151
        %s261 = smul.u32 2, %s21
        %p262 = scmp.lt.s32.totalorder %s20, 1
        %s263 = scalar_select %p262, %s20, 1
        %p264 = scmp.lt.s32.totalorder %s261, 1
        %s265 = scalar_select %p264, %s261, 1
        %s266 = smul.addr %s263, 4
        %s267 = sadd.s32 %s265, %s266
        %s268 = smul.addr %s267, 8
        %s269 = scalar_lea.vmem %s4, %s268
        %s270 = smul.u32 2, %s21
        %p271 = scmp.lt.s32.totalorder %s20, 1
        %s272 = scalar_select %p271, %s20, 1
        %p273 = scmp.lt.s32.totalorder %s270, 1
        %s274 = scalar_select %p273, %s270, 1
        %s275 = smul.addr %s272, 4
        %s276 = sadd.s32 %s274, %s275
        %s277 = smul.addr %s276, 8
        %s278 = scalar_lea.vmem %s1, %s277
        %s279 = smul.u32 2, %s21
        %p280 = scmp.lt.s32.totalorder %s20, 1
        %s281 = scalar_select %p280, %s20, 1
        %s282 = smul.addr %s281, 2
        %s283 = smul.addr %s282, 8
        %s284 = scalar_lea.vmem %s2, %s283
        %s285 = smul.u32 2, %s21
        %p286 = scmp.lt.s32.totalorder %s20, 1
        %s287 = scalar_select %p286, %s20, 1
        %p288 = scmp.lt.s32.totalorder %s285, 1
        %s289 = scalar_select %p288, %s285, 1
        %s290 = smul.addr %s287, 2
        %s291 = sadd.s32 %s289, %s290
        %s292 = scalar_lea.vmem %s3, %s291
        %s293 = smul.u32 2, %s21
        %s294 = smul.u32 2, %s21
        %p295 = scmp.lt.s32.totalorder %s20, 1
        %s296 = scalar_select %p295, %s20, 1
        %p297 = scmp.lt.s32.totalorder %s294, 1
        %s298 = scalar_select %p297, %s294, 1
        %s299 = smul.addr %s296, 4
        %s300 = sadd.s32 %s298, %s299
        %s301 = smul.addr %s300, 8
        %s302 = scalar_lea.vmem %s4, %s301
        %s303 = smul.u32 2, %s21
        %s304 = sld [smem:[#allocation2]]
        %s305 = sld [smem:[#allocation2 + $0x1]]
        %v306 = vld [vmem:[%s292] sm:$0x3]
        %v307 = vstv %s304
        %v308 = vsub.f32 %v306, %v307
        %v309 = vstv %s305
        %v310 = vmul.f32 %v308, %v309
        %v311 = vld [vmem:[%s284] sm:$0xff]
        %v312 = vld [vmem:[%s284 + $0x8] sm:$0xff]
        %314 = vset.pattern.permute.xlu0 0
        %315 = vperm.xlu0 %314, %v311
        %v316 = vpop.permute.xlu0 %315
        %319 = vset.pattern.permute.xlu0 0
        %320 = vperm.xlu0 %319, %v312
        %v321 = vpop.permute.xlu0 %320
        %v324 = vlaneseq
        %v325 = vshrl.u32 %v324, 7
        %v326 = vsub.s32 0, %v325
        %v327 = vrot.slane %v310, %v326
        %v328 = vlaneseq
        %v329 = vshrl.u32 %v328, 7
        %v330 = vsub.s32 1, %v329
        %v331 = vrot.slane %v310, %v330
        %v334 = vadd.f32 %v316, %v327
        %v335 = vadd.f32 %v316, %v331
        %v336 = vadd.f32 %v321, %v327
        %v337 = vadd.f32 %v321, %v331
        %v338 = vxor.u32 %v334, 2147483648
        %v339 = vxor.u32 %v335, 2147483648
        %v340 = vxor.u32 %v336, 2147483648
        %v341 = vxor.u32 %v337, 2147483648
        %v342 = vmul.f32 %v338, 1.442695
        %v343 = vpow.pop %v342
        %v344 = vmul.f32 %v339, 1.442695
        %v345 = vpow.pop %v344
        %v346 = vmul.f32 %v340, 1.442695
        %v347 = vpow.pop %v346
        %v348 = vmul.f32 %v341, 1.442695
        %v349 = vpow.pop %v348
        %v350 = vadd.f32 %v343, 1.0
        %v351 = vadd.f32 %v345, 1.0
        %v352 = vadd.f32 %v347, 1.0
        %v353 = vadd.f32 %v349, 1.0
        %v354 = vrcp.pop %v350
        %v355 = vmul.f32 1.0, %v354
        %v356 = vrcp.pop %v351
        %v357 = vmul.f32 1.0, %v356
        %v358 = vrcp.pop %v352
        %v359 = vmul.f32 1.0, %v358
        %v360 = vrcp.pop %v353
        %v361 = vmul.f32 1.0, %v360
        %v362 = vadd.f32 %v355, 1.0
        %v363 = vadd.f32 %v357, 1.0
        %v364 = vadd.f32 %v359, 1.0
        %v365 = vadd.f32 %v361, 1.0
        %v366 = vld [vmem:[%s278] sm:$0xff]
        %v367 = vld [vmem:[%s278 + $0x8] sm:$0xff]
        %v368 = vld [vmem:[%s278 + $0x10] sm:$0xff]
        %v369 = vld [vmem:[%s278 + $0x18] sm:$0xff]
        %v370 = vmul.f32 %v362, %v366
        %v371 = vmul.f32 %v363, %v367
        %v372 = vmul.f32 %v364, %v368
        %v373 = vmul.f32 %v365, %v369
        %374 = vst [vmem:[%s302] sm:$0xff] %v370
        %375 = vst [vmem:[%s302 + $0x8] sm:$0xff] %v371
        %376 = vst [vmem:[%s302 + $0x10] sm:$0xff] %v372
        %377 = vst [vmem:[%s302 + $0x18] sm:$0xff] %v373
        %s378 = smul.u32 2, %s21
        %p379 = scmp.lt.s32.totalorder %s20, 1
        %s380 = scalar_select %p379, %s20, 1
        %p381 = scmp.lt.s32.totalorder %s378, 1
        %s382 = scalar_select %p381, %s378, 1
        %s383 = smul.addr %s380, 4
        %s384 = sadd.s32 %s382, %s383
        %s385 = smul.addr %s384, 8
        %s386 = scalar_lea.vmem %s4, %s385
        // Predicated region
        $region41: #{_lambda_.5} parent=35 // pred_check
          %p387 = pneg %p151
        $region42: #{_lambda_.5} parent=35 // pred_check_branch
          %389 = sbr.rel (%p387) target = $region44
        $region43: #{_lambda_.5} parent=35 // pred_region
          %s390 = smul.u32 2, %s21
        $region44: #{_lambda_.5} parent=35 // pred_fallthru
          _
      $region36: #{_lambda_.5} parent=5 // pred_fallthru
        _
      %p391 = scmp.le.s32.totalorder 2, %s11
      // Predicated region
      $region45: #{_lambda_.5} parent=5 // pred_check
        %p392 = pneg %p391
      $region46: #{_lambda_.5} parent=5 // pred_check_branch
        %394 = sbr.rel (%p392) target = $region48
      $region47: #{_lambda_.5} parent=5 // pred_region
        %s395 = ssub.s32 %s11, 2
        // Predicated region
        $region49: #{_lambda_.5} parent=47 // pred_check
          %p396 = pneg %p157
        $region50: #{_lambda_.5} parent=47 // pred_check_branch
          %398 = sbr.rel (%p396) target = $region52
        $region51: #{_lambda_.5} parent=47 // pred_region
          %s399 = smul.u32 2, %s23
          %p400 = scmp.lt.s32.totalorder %s22, 1
          %s401 = scalar_select %p400, %s22, 1
          %p402 = scmp.lt.s32.totalorder %s399, 1
          %s403 = scalar_select %p402, %s399, 1
          %s404 = smul.addr %s401, 4
          %s405 = sadd.s32 %s403, %s404
          %s406 = smul.addr %s405, 8
          %s407 = scalar_lea.vmem %s4, %s406
        $region52: #{_lambda_.5} parent=47 // pred_fallthru
          _
      $region48: #{_lambda_.5} parent=5 // pred_fallthru
        _
    $region6: #{_lambda_.5} parent=1 // loop_footer
      %s15 = sadd.s32 1, %s11
    $region7: #{_lambda_.5} parent=1 // loop_footer_branch
      %10 = sbr.rel target = $region3
    $region8: #{_lambda_.5} parent=1 // loop_exit
      _
    %408 = vsyncpa [#allocation3], 1
    %s409 = scalar_lea.sflag [#allocation3], 1
    %410 = vsyncpa %s409, 1

// kernel: _lambda_.3
$region0: #{_lambda_.3}
  #allocation0 [shape = 'u32[]', space=smem, size = 0x4, offset = 0x4, fixed_abs, tag = 'smem constant byte address 0x4 - core index']
  #allocation1 [shape = 'u32[144,128]{1,0:T(1,128)}', space=vmem, size = 0x12000, scoped, tag = 'internal scratch']
  #allocation2 [shape = 'f32[4,324]{1,0:T(4,128)}', space=vmem, size = 0x1800, scoped, tag = 'scratch operand']
  #allocation3 [shape = 'f32[36,256]{1,0:T(8,128)}', space=vmem, size = 0xa000, scoped, tag = 'scratch operand']
  %s0 = inlined_call_operand.vmem [shape: f32[2,16,256], index: 0, kind: input, shape index: {}]
  %s1 = inlined_call_operand.vmem [shape: bf16[4,16], index: 1, kind: input, shape index: {}]
  %s2 = inlined_call_operand.vmem [shape: bf16[4,36], index: 2, kind: input, shape index: {}]
  %s3 = inlined_call_operand.vmem [shape: bf16[1,36], index: 3, kind: input, shape index: {}]
  %s4 = inlined_call_operand.vmem [shape: f32[9,256], index: 4, kind: input, shape index: {}]
  %s5 = inlined_call_operand.vmem [shape: f32[2,16,1], index: 5, kind: output, shape index: {0}]
  %s6 = inlined_call_operand.vmem [shape: f32[2,1,256], index: 6, kind: output, shape index: {1}]
  %s7 = inlined_call_operand.vmem [shape: f32[2,1,2], index: 7, kind: output, shape index: {2}]
  %8 = xla_tuple %s5, %s6, %s7
  %s9 = sld [smem:[#allocation0]]
  $region69: #{_lambda_.3} parent=0
    _
  %s11 = ssub.s32 1, %s9
  %s12 = scalar_select 0, %s11, %s9
  loop: start=0, step=1, limit=4
  $region2: #{_lambda_.3} parent=0 // loop_pre_header
    _
  $region3: #{_lambda_.3} parent=0 // loop_header
    %s14 = sphi 0, %s18
    %p15 = scmp.ge.s32.totalorder %s14, 4
    %s24 = sphi 0, %s26
    %s27 = sphi 0, %s24
    %s28 = sphi 0, %s27
    %s44 = sphi 0, %s28
    %s48 = sphi 0, %s48
    %s50 = sphi 0, %s48
    %s51 = sphi 0, %s50
    %s65 = sphi 0, %s51
    %s69 = sphi 0, %s69
    %s71 = sphi 0, %s69
    %s72 = sphi 0, %s71
    %s86 = sphi 0, %s72
    %s90 = sphi 0, %s90
    %s92 = sphi 0, %s90
    %s93 = sphi 0, %s92
    %s107 = sphi 0, %s93
    %s111 = sphi 0, %s111
    %s113 = sphi 0, %s111
    %s114 = sphi 0, %s113
    %s128 = sphi 0, %s114
    %s134 = sphi 0, %s136
    %s137 = sphi 0, %s134
    %s138 = sphi 0, %s137
    %s154 = sphi 0, %s138
    %s160 = sphi 0, %s162
    %s163 = sphi 0, %s160
    %s164 = sphi 0, %s163
    %s180 = sphi 0, %s164
    %s186 = sphi 0, %s188
    %s189 = sphi 0, %s186
    %s190 = sphi 0, %s189
    %s206 = sphi 0, %s190
  $region4: #{_lambda_.3} parent=0 // loop_header_branch
    %17 = sbr.rel (%p15) target = $region8
  $region5: #{_lambda_.3} parent=0 // loop_body
    %s19 = ssub.s32 %s14, 1
    %s20 = ssub.s32 %s14, 2
    %s21 = sadd.s32 %s14, 1
    %s22 = ssub.s32 %s14, %s21
    %p23 = scmp.eq.s32.totalorder %s22, 0
    %s25 = sadd.s32 %s24, 1
    %s26 = scalar_select %p23, %s24, %s25
    %p29 = pneg %p23
    %p30 = scmp.eq.s32.totalorder %s14, 1
    %p31 = por %p29, %p30
    %p32 = scmp.ne.s32.totalorder %s24, %s27
    %p33 = scmp.eq.s32.totalorder %s14, 0
    %p34 = por %p32, %p33
    %p35 = scmp.ne.s32.totalorder %s24, %s27
    %p36 = scmp.eq.s32.totalorder %s19, 1
    %p37 = por %p35, %p36
    %p38 = scmp.ne.s32.totalorder %s27, %s28
    %p39 = scmp.eq.s32.totalorder %s19, 0
    %p40 = por %p38, %p39
    %p41 = scmp.ne.s32.totalorder %s27, %s28
    %p42 = scmp.eq.s32.totalorder %s20, 1
    %p43 = por %p41, %p42
    %p45 = scmp.ne.s32.totalorder %s28, %s44
    %p46 = scmp.eq.s32.totalorder %s20, 0
    %p47 = por %p45, %p46
    %s49 = sadd.s32 %s48, 1
    %p52 = scmp.eq.s32.totalorder %s14, 1
    %p53 = scmp.ne.s32.totalorder %s48, %s50
    %p54 = scmp.eq.s32.totalorder %s14, 0
    %p55 = por %p53, %p54
    %p56 = scmp.ne.s32.totalorder %s48, %s50
    %p57 = scmp.eq.s32.totalorder %s19, 1
    %p58 = por %p56, %p57
    %p59 = scmp.ne.s32.totalorder %s50, %s51
    %p60 = scmp.eq.s32.totalorder %s19, 0
    %p61 = por %p59, %p60
    %p62 = scmp.ne.s32.totalorder %s50, %s51
    %p63 = scmp.eq.s32.totalorder %s20, 1
    %p64 = por %p62, %p63
    %p66 = scmp.ne.s32.totalorder %s51, %s65
    %p67 = scmp.eq.s32.totalorder %s20, 0
    %p68 = por %p66, %p67
    %s70 = sadd.s32 %s69, 1
    %p73 = scmp.eq.s32.totalorder %s14, 1
    %p74 = scmp.ne.s32.totalorder %s69, %s71
    %p75 = scmp.eq.s32.totalorder %s14, 0
    %p76 = por %p74, %p75
    %p77 = scmp.ne.s32.totalorder %s69, %s71
    %p78 = scmp.eq.s32.totalorder %s19, 1
    %p79 = por %p77, %p78
    %p80 = scmp.ne.s32.totalorder %s71, %s72
    %p81 = scmp.eq.s32.totalorder %s19, 0
    %p82 = por %p80, %p81
    %p83 = scmp.ne.s32.totalorder %s71, %s72
    %p84 = scmp.eq.s32.totalorder %s20, 1
    %p85 = por %p83, %p84
    %p87 = scmp.ne.s32.totalorder %s72, %s86
    %p88 = scmp.eq.s32.totalorder %s20, 0
    %p89 = por %p87, %p88
    %s91 = sadd.s32 %s90, 1
    %p94 = scmp.eq.s32.totalorder %s14, 1
    %p95 = scmp.ne.s32.totalorder %s90, %s92
    %p96 = scmp.eq.s32.totalorder %s14, 0
    %p97 = por %p95, %p96
    %p98 = scmp.ne.s32.totalorder %s90, %s92
    %p99 = scmp.eq.s32.totalorder %s19, 1
    %p100 = por %p98, %p99
    %p101 = scmp.ne.s32.totalorder %s92, %s93
    %p102 = scmp.eq.s32.totalorder %s19, 0
    %p103 = por %p101, %p102
    %p104 = scmp.ne.s32.totalorder %s92, %s93
    %p105 = scmp.eq.s32.totalorder %s20, 1
    %p106 = por %p104, %p105
    %p108 = scmp.ne.s32.totalorder %s93, %s107
    %p109 = scmp.eq.s32.totalorder %s20, 0
    %p110 = por %p108, %p109
    %s112 = sadd.s32 %s111, 1
    %p115 = scmp.eq.s32.totalorder %s14, 1
    %p116 = scmp.ne.s32.totalorder %s111, %s113
    %p117 = scmp.eq.s32.totalorder %s14, 0
    %p118 = por %p116, %p117
    %p119 = scmp.ne.s32.totalorder %s111, %s113
    %p120 = scmp.eq.s32.totalorder %s19, 1
    %p121 = por %p119, %p120
    %p122 = scmp.ne.s32.totalorder %s113, %s114
    %p123 = scmp.eq.s32.totalorder %s19, 0
    %p124 = por %p122, %p123
    %p125 = scmp.ne.s32.totalorder %s113, %s114
    %p126 = scmp.eq.s32.totalorder %s20, 1
    %p127 = por %p125, %p126
    %p129 = scmp.ne.s32.totalorder %s114, %s128
    %p130 = scmp.eq.s32.totalorder %s20, 0
    %p131 = por %p129, %p130
    %s132 = ssub.s32 %s14, %s21
    %p133 = scmp.eq.s32.totalorder %s132, 0
    %s135 = sadd.s32 %s134, 1
    %s136 = scalar_select %p133, %s134, %s135
    %p139 = pneg %p133
    %p140 = scmp.eq.s32.totalorder %s14, 1
    %p141 = por %p139, %p140
    %p142 = scmp.ne.s32.totalorder %s134, %s137
    %p143 = scmp.eq.s32.totalorder %s14, 0
    %p144 = por %p142, %p143
    %p145 = scmp.ne.s32.totalorder %s134, %s137
    %p146 = scmp.eq.s32.totalorder %s19, 1
    %p147 = por %p145, %p146
    %p148 = scmp.ne.s32.totalorder %s137, %s138
    %p149 = scmp.eq.s32.totalorder %s19, 0
    %p150 = por %p148, %p149
    %p151 = scmp.ne.s32.totalorder %s137, %s138
    %p152 = scmp.eq.s32.totalorder %s20, 1
    %p153 = por %p151, %p152
    %p155 = scmp.ne.s32.totalorder %s138, %s154
    %p156 = scmp.eq.s32.totalorder %s20, 0
    %p157 = por %p155, %p156
    %s158 = ssub.s32 %s14, %s21
    %p159 = scmp.eq.s32.totalorder %s158, 0
    %s161 = sadd.s32 %s160, 1
    %s162 = scalar_select %p159, %s160, %s161
    %p165 = pneg %p159
    %p166 = scmp.eq.s32.totalorder %s14, 1
    %p167 = por %p165, %p166
    %p168 = scmp.ne.s32.totalorder %s160, %s163
    %p169 = scmp.eq.s32.totalorder %s14, 0
    %p170 = por %p168, %p169
    %p171 = scmp.ne.s32.totalorder %s160, %s163
    %p172 = scmp.eq.s32.totalorder %s19, 1
    %p173 = por %p171, %p172
    %p174 = scmp.ne.s32.totalorder %s163, %s164
    %p175 = scmp.eq.s32.totalorder %s19, 0
    %p176 = por %p174, %p175
    %p177 = scmp.ne.s32.totalorder %s163, %s164
    %p178 = scmp.eq.s32.totalorder %s20, 1
    %p179 = por %p177, %p178
    %p181 = scmp.ne.s32.totalorder %s164, %s180
    %p182 = scmp.eq.s32.totalorder %s20, 0
    %p183 = por %p181, %p182
    %s184 = ssub.s32 %s14, %s21
    %p185 = scmp.eq.s32.totalorder %s184, 0
    %s187 = sadd.s32 %s186, 1
    %s188 = scalar_select %p185, %s186, %s187
    %p191 = pneg %p185
    %p192 = scmp.eq.s32.totalorder %s14, 1
    %p193 = por %p191, %p192
    %p194 = scmp.ne.s32.totalorder %s186, %s189
    %p195 = scmp.eq.s32.totalorder %s14, 0
    %p196 = por %p194, %p195
    %p197 = scmp.ne.s32.totalorder %s186, %s189
    %p198 = scmp.eq.s32.totalorder %s19, 1
    %p199 = por %p197, %p198
    %p200 = scmp.ne.s32.totalorder %s189, %s190
    %p201 = scmp.eq.s32.totalorder %s19, 0
    %p202 = por %p200, %p201
    %p203 = scmp.ne.s32.totalorder %s189, %s190
    %p204 = scmp.eq.s32.totalorder %s20, 1
    %p205 = por %p203, %p204
    %p207 = scmp.ne.s32.totalorder %s190, %s206
    %p208 = scmp.eq.s32.totalorder %s20, 0
    %p209 = por %p207, %p208
    %p210 = scmp.le.s32.totalorder 1, %s14
    %p211 = scmp.lt.s32.totalorder %s14, 3
    %p212 = pnand %p210, %p211
    %p213 = pneg %p212
    // Predicated region
    $region9: #{_lambda_.3} parent=5 // pred_check
      _
    $region10: #{_lambda_.3} parent=5 // pred_check_branch
      %215 = sbr.rel (%p212) target = $region12
    $region11: #{_lambda_.3} parent=5 // pred_region
      %s216 = ssub.s32 %s14, 1
      // Predicated region
      $region13: #{_lambda_.3} parent=11 // pred_check
        %p217 = pneg %p61
      $region14: #{_lambda_.3} parent=11 // pred_check_branch
        %219 = sbr.rel (%p217) target = $region16
      $region15: #{_lambda_.3} parent=11 // pred_region
        _
      $region16: #{_lambda_.3} parent=11 // pred_fallthru
        _
      // Predicated region
      $region17: #{_lambda_.3} parent=11 // pred_check
        %p220 = pneg %p82
      $region18: #{_lambda_.3} parent=11 // pred_check_branch
        %222 = sbr.rel (%p220) target = $region20
      $region19: #{_lambda_.3} parent=11 // pred_region
        _
      $region20: #{_lambda_.3} parent=11 // pred_fallthru
        _
      // Predicated region
      $region21: #{_lambda_.3} parent=11 // pred_check
        %p223 = pneg %p103
      $region22: #{_lambda_.3} parent=11 // pred_check_branch
        %225 = sbr.rel (%p223) target = $region24
      $region23: #{_lambda_.3} parent=11 // pred_region
        _
      $region24: #{_lambda_.3} parent=11 // pred_fallthru
        _
      // Predicated region
      $region25: #{_lambda_.3} parent=11 // pred_check
        %p226 = pneg %p124
      $region26: #{_lambda_.3} parent=11 // pred_check_branch
        %228 = sbr.rel (%p226) target = $region28
      $region27: #{_lambda_.3} parent=11 // pred_region
        _
      $region28: #{_lambda_.3} parent=11 // pred_fallthru
        _
    $region12: #{_lambda_.3} parent=5 // pred_fallthru
      _
    %p229 = scmp.lt.s32.totalorder %s14, 2
    // Predicated region
    $region29: #{_lambda_.3} parent=5 // pred_check
      %p230 = pneg %p229
    $region30: #{_lambda_.3} parent=5 // pred_check_branch
      %232 = sbr.rel (%p230) target = $region32
    $region31: #{_lambda_.3} parent=5 // pred_region
      // Predicated region
      $region33: #{_lambda_.3} parent=31 // pred_check
        %p233 = pneg %p34
      $region34: #{_lambda_.3} parent=31 // pred_check_branch
        %235 = sbr.rel (%p233) target = $region36
      $region35: #{_lambda_.3} parent=31 // pred_region
        %p236 = scmp.lt.s32.totalorder %s14, 1
        %s237 = scalar_select %p236, %s14, 1
        %s238 = smul.addr %s237, 4
        %s239 = smul.addr %s238, 8
        %s240 = scalar_lea.vmem %s0, %s239
      $region36: #{_lambda_.3} parent=31 // pred_fallthru
        _
    $region32: #{_lambda_.3} parent=5 // pred_fallthru
      _
    %p241 = scmp.le.s32.totalorder 1, %s14
    %p242 = scmp.lt.s32.totalorder %s14, 3
    %p243 = pnand %p241, %p242
    %p244 = pneg %p243
    // Predicated region
    $region37: #{_lambda_.3} parent=5 // pred_check
      _
    $region38: #{_lambda_.3} parent=5 // pred_check_branch
      %246 = sbr.rel (%p243) target = $region40
    $region39: #{_lambda_.3} parent=5 // pred_region
      %s247 = ssub.s32 %s14, 1
      %p248 = scmp.lt.s32.totalorder %s19, 1
      %s249 = scalar_select %p248, %s19, 1
      %s250 = smul.addr %s249, 4
      %s251 = smul.addr %s250, 8
      %s252 = scalar_lea.vmem %s0, %s251
      %p253 = pneg %p40
      %p254 = pneg %p37
      %p255 = pneg %p61
      %p256 = pneg %p58
      %p257 = pneg %p82
      %p258 = pneg %p79
      %p259 = pneg %p103
      %p260 = pneg %p100
      %p261 = pneg %p124
      %p262 = pneg %p121
      %p263 = pneg %p150
      %p264 = pneg %p147
      %p265 = scmp.lt.s32.totalorder %s19, 1
      %s266 = scalar_select %p265, %s19, 1
      %s267 = smul.addr %s266, 2
      %s268 = smul.addr %s267, 8
      %s269 = scalar_lea.vmem %s5, %s268
      %p270 = pneg %p176
      %p271 = pneg %p173
      %p272 = scmp.lt.s32.totalorder %s19, 1
      %s273 = scalar_select %p272, %s19, 1
      %s274 = smul.addr %s273, 2
      %s275 = scalar_lea.vmem %s6, %s274
      %p276 = pneg %p202
      %p277 = pneg %p199
      %p278 = scmp.lt.s32.totalorder %s19, 1
      %s279 = scalar_select %p278, %s19, 1
      %s280 = scalar_lea.vmem %s7, %s279
      %p281 = scmp.lt.s32.totalorder %s19, 1
      %s282 = scalar_select %p281, %s19, 1
      %s283 = smul.addr %s282, 4
      %s284 = smul.addr %s283, 8
      %s285 = scalar_lea.vmem %s0, %s284
      %p286 = scmp.lt.s32.totalorder %s19, 1
      %s287 = scalar_select %p286, %s19, 1
      %s288 = smul.addr %s287, 2
      %s289 = smul.addr %s288, 8
      %s290 = scalar_lea.vmem %s5, %s289
      %p291 = scmp.lt.s32.totalorder %s19, 1
      %s292 = scalar_select %p291, %s19, 1
      %s293 = smul.addr %s292, 2
      %s294 = scalar_lea.vmem %s6, %s293
      %p295 = scmp.lt.s32.totalorder %s19, 1
      %s296 = scalar_select %p295, %s19, 1
      %s297 = scalar_lea.vmem %s7, %s296
      %v299 = vld [vmem:[%s285] sm:$0xff]
      %v300 = vld [vmem:[%s285 + $0x8] sm:$0xff]
      %v301 = vld [vmem:[%s285 + $0x10] sm:$0xff]
      %v302 = vld [vmem:[%s285 + $0x18] sm:$0xff]
      %v303 = vadd.f32 %v299, %v300
      %304 = vadd.xlane.f32.xlu0 %v303
      %v305 = vpop.xlane.xlu0 %304
      %v306 = vadd.f32 %v301, %v302
      %307 = vadd.xlane.f32.xlu0 %v306
      %v308 = vpop.xlane.xlu0 %307
      %v309 = vrcp.pop 256.0
      %v310 = vmul.f32 %v305, %v309
      %v311 = vmul.f32 %v308, %v309
      %vm312 = vcmask 7168
      %313 = vst.msk [vmem:[%s290] sm:$0xff] %vm312, %v310
      %314 = vst.msk [vmem:[%s290 + $0x8] sm:$0xff] %vm312, %v311
      %v315 = vld [vmem:[%s1] sm:$0x3]
      %v316 = vpack.c.bf16 %v301, %v299
      %v317 = vpack.c.bf16 %v302, %v300
      %vm318 = vcmask 130048
      %v320 = vsel %vm318, %v315, 0
      %322 = vmatprep.subr.bf16.mxu0 0
      %323 = vmatpush1.bf16.msra.mxu0 0
      %324 = vmatprep.subr.bf16.mxu0 0
      %325 = vmatpush1.bf16.msra.mxu0 0
      %326 = vmatprep.subr.bf16.mxu0 0
      %327 = vmatpush1.bf16.msra.mxu0 0
      %328 = vmatprep.subr.bf16.mxu0 0
      %329 = vmatpush1.bf16.msra.mxu0 0
      %330 = vmatprep.subr.bf16.mxu0 0
      %331 = vmatpush1.bf16.msra.mxu0 0
      %332 = vmatprep.subr.bf16.mxu0 0
      %333 = vmatpush1.bf16.msra.mxu0 0
      %334 = vmatprep.subr.bf16.mxu0 0
      %335 = vmatpush1.bf16.msra.mxu0 0
      %336 = vmatprep.subr.bf16.mxu0 %v317
      %337 = vmatpush1.bf16.msra.mxu0 %v316
      %338 = vmatprep.subr.bf16.mxu0 0
      %339 = vmatpush2.bf16.msra.mxu0 0
      %340 = vmatprep.subr.bf16.mxu0 0
      %341 = vmatpush2.bf16.msra.mxu0 0
      %342 = vmatprep.subr.bf16.mxu0 0
      %343 = vmatpush2.bf16.msra.mxu0 0
      %344 = vmatprep.subr.bf16.mxu0 0
      %345 = vmatpush2.bf16.msra.mxu0 0
      %346 = vmatprep.subr.bf16.mxu0 0
      %347 = vmatpush2.bf16.msra.mxu0 0
      %348 = vmatprep.subr.bf16.mxu0 0
      %349 = vmatpush2.bf16.msra.mxu0 0
      %350 = vmatprep.subr.bf16.mxu0 0
      %351 = vmatpush2.bf16.msra.mxu0 0
      %352 = vmatprep.subr.bf16.mxu0 0
      %353 = vmatpush2.bf16.msra.mxu0 0
      %354 = vmatprep.mubr.bf16.mxu0 0
      %355 = vmatmul.mubr.bf16.gmra.mxu0 %v320
      %v356 = vpop.f32.mrf.mxu0
      %v357 = vadd.f32 0.0, %v356
      %v358 = vpop.f32.mrf.mxu0
      %v359 = vadd.f32 0.0, %v358
      %v360 = vpop.f32.mrf.mxu0
      %v361 = vpop.f32.mrf.mxu0
      %362 = vdwg.mxu0
      %vm363 = vcmask 273408
      %364 = vst.msk [vmem:[#allocation2] sm:$0xf] %vm363, 0.0
      %vm365 = vcmask 552208
      %366 = vst.msk [vmem:[#allocation2 + $0x8] sm:$0xf] %vm365, 0.0
      %v367 = vld [vmem:[%s2] sm:$0x3]
      %v370 = vcombine.low %v357, %v359
      %371 = vrot.lane.b32.xlu0 %v370, 34
      %v372 = vpop.permute.xlu0 %371
      %v373 = vrot.slane %v372, 4
      %vm374 = vcmask 277504
      %v375 = vsel %vm374, %v373, %v372
      %vm378 = vcmask 1043728
      %vm379 = vcmask 1047556
      %vm380 = vmor %vm379, %vm378
      %381 = vst.msk [vmem:[#allocation2] sm:$0xff] %vm380, %v375
      %382 = vst.msk [vmem:[#allocation2 + $0x8] sm:$0xf] %vm363, %v373
      %v383 = vld [vmem:[#allocation2] sm:$0xff]
      %v384 = vld [vmem:[%s4] ss:$8 sm:$0x3]
      %v386 = vlaneseq
      %v387 = vshrl.u32 %v386, 7
      %v388 = vsub.s32 0, %v387
      %v389 = vrot.slane %v384, %v388
      %v390 = vlaneseq
      %v391 = vshrl.u32 %v390, 7
      %v392 = vsub.s32 1, %v391
      %v393 = vrot.slane %v384, %v392
      %v394 = vcombine.low %v389, %v393
      %v396 = vmul.f32 %v383, %v394
      %v398 = vcombine.high %v396, %v396
      %400 = vst [vmem:[#allocation3] sm:$0xf] %v396
      %401 = vst [vmem:[#allocation3 + $0x8] sm:$0xf] %v398
      %v402 = vld [vmem:[#allocation2] sm:$0xff]
      %v403 = vld [vmem:[#allocation2 + $0x8] sm:$0xf]
      %s404 = scalar_lea.vmem %s4, 1
      %v405 = vld [vmem:[%s404] ss:$8 sm:$0x3]
      %v407 = vlaneseq
      %v408 = vshrl.u32 %v407, 7
      %v409 = vsub.s32 0, %v408
      %v410 = vrot.slane %v405, %v409
      %v411 = vlaneseq
      %v412 = vshrl.u32 %v411, 7
      %v413 = vsub.s32 1, %v412
      %v414 = vrot.slane %v405, %v413
      %v415 = vcombine.low %v410, %v414
      %416 = vrot.lane.b32.xlu0 %v415, 2
      %v417 = vpop.permute.xlu0 %416
      %v418 = vrot.slane %v417, 4
      %vm419 = vcmask 15360
      %v420 = vsel %vm419, %v418, %v417
      %v423 = vmul.f32 %v402, %v420
      %v424 = vmul.f32 %v403, %v418
      %v427 = vcombine.low %v423, %v423
      %v428 = vcombine.low %v424, %v424
      %429 = vrot.lane.b32.xlu0 %v427, 126
      %v430 = vpop.permute.xlu0 %429
      %431 = vrot.lane.b32.xlu0 %v423, 126
      %v432 = vpop.permute.xlu0 %431
      %433 = vrot.lane.b32.xlu0 %v428, 126
      %v434 = vpop.permute.xlu0 %433
      %vm435 = vcmask 1031168
      %v436 = vsel %vm435, %v430, %v432
      %v437 = vsel %vm435, %v432, %v434
      %440 = vst [vmem:[#allocation3] sm:$0xf0] %v436
      %441 = vst [vmem:[#allocation3 + $0x8] sm:$0xf0] %v437
      %v442 = vld [vmem:[#allocation2] sm:$0xff]
      %v443 = vld [vmem:[#allocation2 + $0x8] sm:$0xf]
      %s444 = scalar_lea.vmem %s4, 2
      %v445 = vld [vmem:[%s444] ss:$8 sm:$0x3]
      %v447 = vlaneseq
      %v448 = vshrl.u32 %v447, 7
      %v449 = vsub.s32 0, %v448
      %v450 = vrot.slane %v445, %v449
      %v451 = vlaneseq
      %v452 = vshrl.u32 %v451, 7
      %v453 = vsub.s32 1, %v452
      %v454 = vrot.slane %v445, %v453
      %v455 = vcombine.low %v450, %v454
      %456 = vrot.lane.b32.xlu0 %v455, 4
      %v457 = vpop.permute.xlu0 %456
      %v458 = vrot.slane %v457, 4
      %vm459 = vcmask 31744
      %v460 = vsel %vm459, %v458, %v457
      %v463 = vmul.f32 %v442, %v460
      %v464 = vmul.f32 %v443, %v458
      %v467 = vcombine.high %v463, %v463
      %468 = vrot.lane.b32.xlu0 %v463, 124
      %v469 = vpop.permute.xlu0 %468
      %470 = vrot.lane.b32.xlu0 %v467, 124
      %v471 = vpop.permute.xlu0 %470
      %472 = vrot.lane.b32.xlu0 %v464, 124
      %v473 = vpop.permute.xlu0 %472
      %vm474 = vcmask 1014784
      %v475 = vsel %vm474, %v469, %v471
      %v476 = vsel %vm474, %v471, %v473
      %479 = vst [vmem:[#allocation3 + $0x10] sm:$0xf] %v475
      %480 = vst [vmem:[#allocation3 + $0x18] sm:$0xf] %v476
      %v481 = vld [vmem:[#allocation2] sm:$0xff]
      %v482 = vld [vmem:[#allocation2 + $0x8] sm:$0xf]
      %s483 = scalar_lea.vmem %s4, 3
      %v484 = vld [vmem:[%s483] ss:$8 sm:$0x3]
      %v486 = vlaneseq
      %v487 = vshrl.u32 %v486, 7
      %v488 = vsub.s32 0, %v487
      %v489 = vrot.slane %v484, %v488
      %v490 = vlaneseq
      %v491 = vshrl.u32 %v490, 7
      %v492 = vsub.s32 1, %v491
      %v493 = vrot.slane %v484, %v492
      %v494 = vcombine.low %v489, %v493
      %495 = vrot.lane.b32.xlu0 %v494, 32
      %v496 = vpop.permute.xlu0 %495
      %v497 = vrot.slane %v496, 4
      %vm498 = vcmask 261120
      %v499 = vsel %vm498, %v497, %v496
      %v502 = vmul.f32 %v481, %v499
      %v503 = vmul.f32 %v482, %v497
      %v506 = vcombine.low %v502, %v502
      %v507 = vcombine.low %v503, %v503
      %508 = vrot.lane.b32.xlu0 %v506, 96
      %v509 = vpop.permute.xlu0 %508
      %510 = vrot.lane.b32.xlu0 %v502, 96
      %v511 = vpop.permute.xlu0 %510
      %512 = vrot.lane.b32.xlu0 %v507, 96
      %v513 = vpop.permute.xlu0 %512
      %vm514 = vcmask 785408
      %v515 = vsel %vm514, %v509, %v511
      %v516 = vsel %vm514, %v511, %v513
      %519 = vst [vmem:[#allocation3 + $0x10] sm:$0xf0] %v515
      %520 = vst [vmem:[#allocation3 + $0x18] sm:$0xf0] %v516
      %v521 = vld [vmem:[#allocation2] sm:$0xff]
      %v522 = vld [vmem:[#allocation2 + $0x8] sm:$0xf]
      %s523 = scalar_lea.vmem %s4, 4
      %v524 = vld [vmem:[%s523] ss:$8 sm:$0x3]
      %v526 = vlaneseq
      %v527 = vshrl.u32 %v526, 7
      %v528 = vsub.s32 0, %v527
      %v529 = vrot.slane %v524, %v528
      %v530 = vlaneseq
      %v531 = vshrl.u32 %v530, 7
      %v532 = vsub.s32 1, %v531
      %v533 = vrot.slane %v524, %v532
      %v534 = vcombine.low %v529, %v533
      %535 = vrot.lane.b32.xlu0 %v534, 34
      %v536 = vpop.permute.xlu0 %535
      %v537 = vrot.slane %v536, 4
      %v538 = vsel %vm374, %v537, %v536
      %v541 = vmul.f32 %v521, %v538
      %v542 = vmul.f32 %v522, %v537
      %v545 = vcombine.high %v541, %v541
      %546 = vrot.lane.b32.xlu0 %v541, 94
      %v547 = vpop.permute.xlu0 %546
      %548 = vrot.lane.b32.xlu0 %v545, 94
      %v549 = vpop.permute.xlu0 %548
      %550 = vrot.lane.b32.xlu0 %v542, 94
      %v551 = vpop.permute.xlu0 %550
      %vm552 = vcmask 769024
      %v553 = vsel %vm552, %v547, %v549
      %v554 = vsel %vm552, %v549, %v551
      %557 = vst [vmem:[#allocation3 + $0x20] sm:$0xf] %v553
      %558 = vst [vmem:[#allocation3 + $0x28] sm:$0xf] %v554
      %v559 = vld [vmem:[#allocation2] sm:$0xff]
      %v560 = vld [vmem:[#allocation2 + $0x8] sm:$0xf]
      %s561 = scalar_lea.vmem %s4, 5
      %v562 = vld [vmem:[%s561] ss:$8 sm:$0x3]
      %v564 = vlaneseq
      %v565 = vshrl.u32 %v564, 7
      %v566 = vsub.s32 0, %v565
      %v567 = vrot.slane %v562, %v566
      %v568 = vlaneseq
      %v569 = vshrl.u32 %v568, 7
      %v570 = vsub.s32 1, %v569
      %v571 = vrot.slane %v562, %v570
      %v572 = vcombine.low %v567, %v571
      %573 = vrot.lane.b32.xlu0 %v572, 36
      %v574 = vpop.permute.xlu0 %573
      %v575 = vrot.slane %v574, 4
      %vm576 = vcmask 293888
      %v577 = vsel %vm576, %v575, %v574
      %v580 = vmul.f32 %v559, %v577
      %v581 = vmul.f32 %v560, %v575
      %v584 = vcombine.low %v580, %v580
      %v585 = vcombine.low %v581, %v581
      %586 = vrot.lane.b32.xlu0 %v584, 92
      %v587 = vpop.permute.xlu0 %586
      %588 = vrot.lane.b32.xlu0 %v580, 92
      %v589 = vpop.permute.xlu0 %588
      %590 = vrot.lane.b32.xlu0 %v585, 92
      %v591 = vpop.permute.xlu0 %590
      %vm592 = vcmask 752640
      %v593 = vsel %vm592, %v587, %v589
      %v594 = vsel %vm592, %v589, %v591
      %597 = vst [vmem:[#allocation3 + $0x20] sm:$0xf0] %v593
      %598 = vst [vmem:[#allocation3 + $0x28] sm:$0xf0] %v594
      %v599 = vld [vmem:[#allocation2] sm:$0xff]
      %v600 = vld [vmem:[#allocation2 + $0x8] sm:$0xf]
      %s601 = scalar_lea.vmem %s4, 6
      %v602 = vld [vmem:[%s601] ss:$8 sm:$0x3]
      %v604 = vlaneseq
      %v605 = vshrl.u32 %v604, 7
      %v606 = vsub.s32 0, %v605
      %v607 = vrot.slane %v602, %v606
      %v608 = vlaneseq
      %v609 = vshrl.u32 %v608, 7
      %v610 = vsub.s32 1, %v609
      %v611 = vrot.slane %v602, %v610
      %v612 = vcombine.low %v607, %v611
      %613 = vrot.lane.b32.xlu0 %v612, 64
      %v614 = vpop.permute.xlu0 %613
      %v615 = vrot.slane %v614, 4
      %vm616 = vcmask 523264
      %v617 = vsel %vm616, %v615, %v614
      %v620 = vmul.f32 %v599, %v617
      %v621 = vmul.f32 %v600, %v615
      %v624 = vcombine.high %v620, %v620
      %625 = vrot.lane.b32.xlu0 %v620, 64
      %v626 = vpop.permute.xlu0 %625
      %627 = vrot.lane.b32.xlu0 %v624, 64
      %v628 = vpop.permute.xlu0 %627
      %629 = vrot.lane.b32.xlu0 %v621, 64
      %v630 = vpop.permute.xlu0 %629
      %v631 = vsel %vm616, %v626, %v628
      %v632 = vsel %vm616, %v628, %v630
      %635 = vst [vmem:[#allocation3 + $0x30] sm:$0xf] %v631
      %636 = vst [vmem:[#allocation3 + $0x38] sm:$0xf] %v632
      %v637 = vld [vmem:[#allocation2] sm:$0xff]
      %v638 = vld [vmem:[#allocation2 + $0x8] sm:$0xf]
      %s639 = scalar_lea.vmem %s4, 7
      %v640 = vld [vmem:[%s639] ss:$8 sm:$0x3]
      %v642 = vlaneseq
      %v643 = vshrl.u32 %v642, 7
      %v644 = vsub.s32 0, %v643
      %v645 = vrot.slane %v640, %v644
      %v646 = vlaneseq
      %v647 = vshrl.u32 %v646, 7
      %v648 = vsub.s32 1, %v647
      %v649 = vrot.slane %v640, %v648
      %v650 = vcombine.low %v645, %v649
      %651 = vrot.lane.b32.xlu0 %v650, 66
      %v652 = vpop.permute.xlu0 %651
      %v653 = vrot.slane %v652, 4
      %vm654 = vcmask 539648
      %v655 = vsel %vm654, %v653, %v652
      %v658 = vmul.f32 %v637, %v655
      %v659 = vmul.f32 %v638, %v653
      %v662 = vcombine.low %v658, %v658
      %v663 = vcombine.low %v659, %v659
      %664 = vrot.lane.b32.xlu0 %v662, 62
      %v665 = vpop.permute.xlu0 %664
      %666 = vrot.lane.b32.xlu0 %v658, 62
      %v667 = vpop.permute.xlu0 %666
      %668 = vrot.lane.b32.xlu0 %v663, 62
      %v669 = vpop.permute.xlu0 %668
      %vm670 = vcmask 506880
      %v671 = vsel %vm670, %v665, %v667
      %v672 = vsel %vm670, %v667, %v669
      %675 = vst [vmem:[#allocation3 + $0x30] sm:$0xf0] %v671
      %676 = vst [vmem:[#allocation3 + $0x38] sm:$0xf0] %v672
      %v677 = vld [vmem:[#allocation2] sm:$0xff]
      %v678 = vld [vmem:[#allocation2 + $0x8] sm:$0xf]
      %s679 = scalar_lea.vmem %s4, 16
      %v680 = vld [vmem:[%s679] ss:$8 sm:$0x3]
      %v682 = vlaneseq
      %v683 = vshrl.u32 %v682, 7
      %v684 = vsub.s32 0, %v683
      %v685 = vrot.slane %v680, %v684
      %v686 = vlaneseq
      %v687 = vshrl.u32 %v686, 7
      %v688 = vsub.s32 1, %v687
      %v689 = vrot.slane %v680, %v688
      %v690 = vcombine.low %v685, %v689
      %691 = vrot.lane.b32.xlu0 %v690, 68
      %v692 = vpop.permute.xlu0 %691
      %v693 = vrot.slane %v692, 4
      %vm694 = vcmask 556032
      %v695 = vsel %vm694, %v693, %v692
      %v698 = vmul.f32 %v677, %v695
      %v699 = vmul.f32 %v678, %v693
      %v702 = vcombine.high %v698, %v698
      %703 = vrot.lane.b32.xlu0 %v698, 60
      %v704 = vpop.permute.xlu0 %703
      %705 = vrot.lane.b32.xlu0 %v702, 60
      %v706 = vpop.permute.xlu0 %705
      %707 = vrot.lane.b32.xlu0 %v699, 60
      %v708 = vpop.permute.xlu0 %707
      %vm709 = vcmask 490496
      %v710 = vsel %vm709, %v704, %v706
      %v711 = vsel %vm709, %v706, %v708
      %714 = vst [vmem:[#allocation3 + $0x40] sm:$0xf] %v710
      %715 = vst [vmem:[#allocation3 + $0x48] sm:$0xf] %v711
      %v716 = vld [vmem:[#allocation3] sm:$0xff]
      %v717 = vld [vmem:[#allocation3 + $0x8] sm:$0xff]
      %v718 = vld [vmem:[#allocation3 + $0x10] sm:$0xff]
      %v719 = vld [vmem:[#allocation3 + $0x18] sm:$0xff]
      %v720 = vld [vmem:[#allocation3 + $0x20] sm:$0xff]
      %v721 = vld [vmem:[#allocation3 + $0x28] sm:$0xff]
      %v722 = vld [vmem:[#allocation3 + $0x30] sm:$0xff]
      %v723 = vld [vmem:[#allocation3 + $0x38] sm:$0xff]
      %v724 = vld [vmem:[#allocation3 + $0x40] sm:$0xf]
      %v725 = vld [vmem:[#allocation3 + $0x48] sm:$0xf]
      %v726 = vpack.c.bf16 %v718, %v716
      %v727 = vpack.c.bf16 %v719, %v717
      %v728 = vpack.c.bf16 %v722, %v720
      %v729 = vpack.c.bf16 %v723, %v721
      %v730 = vpack.c.bf16 %v724, %v724
      %v731 = vpack.c.bf16 %v725, %v725
      %v733 = vsel %vm576, %v367, 0
      %vm735 = vcmask 1041408
      %v737 = vsel %vm735, %v730, 0
      %v740 = vsel %vm735, %v731, 0
      %742 = vmatprep.subr.bf16.mxu0 0
      %743 = vmatpush1.bf16.msra.mxu0 0
      %744 = vmatprep.subr.bf16.mxu0 0
      %745 = vmatpush1.bf16.msra.mxu0 0
      %746 = vmatprep.subr.bf16.mxu0 0
      %747 = vmatpush1.bf16.msra.mxu0 0
      %748 = vmatprep.subr.bf16.mxu0 0
      %749 = vmatpush1.bf16.msra.mxu0 0
      %750 = vmatprep.subr.bf16.mxu0 0
      %751 = vmatpush1.bf16.msra.mxu0 0
      %752 = vmatprep.subr.bf16.mxu0 %v740
      %753 = vmatpush1.bf16.msra.mxu0 %v737
      %754 = vmatprep.subr.bf16.mxu0 %v729
      %755 = vmatpush1.bf16.msra.mxu0 %v728
      %756 = vmatprep.subr.bf16.mxu0 %v727
      %757 = vmatpush1.bf16.msra.mxu0 %v726
      %758 = vmatprep.subr.bf16.mxu0 0
      %759 = vmatpush2.bf16.msra.mxu0 0
      %760 = vmatprep.subr.bf16.mxu0 0
      %761 = vmatpush2.bf16.msra.mxu0 0
      %762 = vmatprep.subr.bf16.mxu0 0
      %763 = vmatpush2.bf16.msra.mxu0 0
      %764 = vmatprep.subr.bf16.mxu0 0
      %765 = vmatpush2.bf16.msra.mxu0 0
      %766 = vmatprep.subr.bf16.mxu0 0
      %767 = vmatpush2.bf16.msra.mxu0 0
      %768 = vmatprep.subr.bf16.mxu0 0
      %769 = vmatpush2.bf16.msra.mxu0 0
      %770 = vmatprep.subr.bf16.mxu0 0
      %771 = vmatpush2.bf16.msra.mxu0 0
      %772 = vmatprep.subr.bf16.mxu0 0
      %773 = vmatpush2.bf16.msra.mxu0 0
      %774 = vmatprep.mubr.bf16.mxu0 0
      %775 = vmatmul.mubr.bf16.gmra.mxu0 %v733
      %v776 = vpop.f32.mrf.mxu0
      %v777 = vadd.f32 0.0, %v776
      %v778 = vpop.f32.mrf.mxu0
      %v779 = vadd.f32 0.0, %v778
      %v780 = vpop.f32.mrf.mxu0
      %v781 = vpop.f32.mrf.mxu0
      %782 = vdwg.mxu0
      %v783 = vld [vmem:[%s3] sm:$0x1]
      %v786 = vcombine.low %v777, %v779
      %787 = vrot.lane.b32.xlu0 %v786, 34
      %v788 = vpop.permute.xlu0 %787
      %v789 = vrot.slane %v788, 4
      %v790 = vsel %vm374, %v789, %v788
      %793 = vst.msk [vmem:[#allocation2] sm:$0xff] %vm380, %v790
      %794 = vst.msk [vmem:[#allocation2 + $0x8] sm:$0xf] %vm363, %v789
      %v795 = vld [vmem:[#allocation2] sm:$0xff]
      %v796 = vld [vmem:[%s4] ss:$8 sm:$0x3]
      %v798 = vlaneseq
      %v799 = vshrl.u32 %v798, 7
      %v800 = vsub.s32 0, %v799
      %v801 = vrot.slane %v796, %v800
      %v802 = vlaneseq
      %v803 = vshrl.u32 %v802, 7
      %v804 = vsub.s32 1, %v803
      %v805 = vrot.slane %v796, %v804
      %v806 = vcombine.low %v801, %v805
      %v808 = vmul.f32 %v795, %v806
      %v810 = vcombine.high %v808, %v808
      %812 = vst [vmem:[#allocation3] sm:$0xf] %v808
      %813 = vst [vmem:[#allocation3 + $0x8] sm:$0xf] %v810
      %v814 = vld [vmem:[#allocation2] sm:$0xff]
      %v815 = vld [vmem:[#allocation2 + $0x8] sm:$0xf]
      %v816 = vld [vmem:[%s404] ss:$8 sm:$0x3]
      %v818 = vlaneseq
      %v819 = vshrl.u32 %v818, 7
      %v820 = vsub.s32 0, %v819
      %v821 = vrot.slane %v816, %v820
      %v822 = vlaneseq
      %v823 = vshrl.u32 %v822, 7
      %v824 = vsub.s32 1, %v823
      %v825 = vrot.slane %v816, %v824
      %v826 = vcombine.low %v821, %v825
      %827 = vrot.lane.b32.xlu0 %v826, 2
      %v828 = vpop.permute.xlu0 %827
      %v829 = vrot.slane %v828, 4
      %v830 = vsel %vm419, %v829, %v828
      %v833 = vmul.f32 %v814, %v830
      %v834 = vmul.f32 %v815, %v829
      %v837 = vcombine.low %v833, %v833
      %v838 = vcombine.low %v834, %v834
      %839 = vrot.lane.b32.xlu0 %v837, 126
      %v840 = vpop.permute.xlu0 %839
      %841 = vrot.lane.b32.xlu0 %v833, 126
      %v842 = vpop.permute.xlu0 %841
      %843 = vrot.lane.b32.xlu0 %v838, 126
      %v844 = vpop.permute.xlu0 %843
      %v845 = vsel %vm435, %v840, %v842
      %v846 = vsel %vm435, %v842, %v844
      %849 = vst [vmem:[#allocation3] sm:$0xf0] %v845
      %850 = vst [vmem:[#allocation3 + $0x8] sm:$0xf0] %v846
      %v851 = vld [vmem:[#allocation2] sm:$0xff]
      %v852 = vld [vmem:[#allocation2 + $0x8] sm:$0xf]
      %v853 = vld [vmem:[%s444] ss:$8 sm:$0x3]
      %v855 = vlaneseq
      %v856 = vshrl.u32 %v855, 7
      %v857 = vsub.s32 0, %v856
      %v858 = vrot.slane %v853, %v857
      %v859 = vlaneseq
      %v860 = vshrl.u32 %v859, 7
      %v861 = vsub.s32 1, %v860
      %v862 = vrot.slane %v853, %v861
      %v863 = vcombine.low %v858, %v862
      %864 = vrot.lane.b32.xlu0 %v863, 4
      %v865 = vpop.permute.xlu0 %864
      %v866 = vrot.slane %v865, 4
      %v867 = vsel %vm459, %v866, %v865
      %v870 = vmul.f32 %v851, %v867
      %v871 = vmul.f32 %v852, %v866
      %v874 = vcombine.high %v870, %v870
      %875 = vrot.lane.b32.xlu0 %v870, 124
      %v876 = vpop.permute.xlu0 %875
      %877 = vrot.lane.b32.xlu0 %v874, 124
      %v878 = vpop.permute.xlu0 %877
      %879 = vrot.lane.b32.xlu0 %v871, 124
      %v880 = vpop.permute.xlu0 %879
      %v881 = vsel %vm474, %v876, %v878
      %v882 = vsel %vm474, %v878, %v880
      %885 = vst [vmem:[#allocation3 + $0x10] sm:$0xf] %v881
      %886 = vst [vmem:[#allocation3 + $0x18] sm:$0xf] %v882
      %v887 = vld [vmem:[#allocation2] sm:$0xff]
      %v888 = vld [vmem:[#allocation2 + $0x8] sm:$0xf]
      %v889 = vld [vmem:[%s483] ss:$8 sm:$0x3]
      %v891 = vlaneseq
      %v892 = vshrl.u32 %v891, 7
      %v893 = vsub.s32 0, %v892
      %v894 = vrot.slane %v889, %v893
      %v895 = vlaneseq
      %v896 = vshrl.u32 %v895, 7
      %v897 = vsub.s32 1, %v896
      %v898 = vrot.slane %v889, %v897
      %v899 = vcombine.low %v894, %v898
      %900 = vrot.lane.b32.xlu0 %v899, 32
      %v901 = vpop.permute.xlu0 %900
      %v902 = vrot.slane %v901, 4
      %v903 = vsel %vm498, %v902, %v901
      %v906 = vmul.f32 %v887, %v903
      %v907 = vmul.f32 %v888, %v902
      %v910 = vcombine.low %v906, %v906
      %v911 = vcombine.low %v907, %v907
      %912 = vrot.lane.b32.xlu0 %v910, 96
      %v913 = vpop.permute.xlu0 %912
      %914 = vrot.lane.b32.xlu0 %v906, 96
      %v915 = vpop.permute.xlu0 %914
      %916 = vrot.lane.b32.xlu0 %v911, 96
      %v917 = vpop.permute.xlu0 %916
      %v918 = vsel %vm514, %v913, %v915
      %v919 = vsel %vm514, %v915, %v917
      %922 = vst [vmem:[#allocation3 + $0x10] sm:$0xf0] %v918
      %923 = vst [vmem:[#allocation3 + $0x18] sm:$0xf0] %v919
      %v924 = vld [vmem:[#allocation2] sm:$0xff]
      %v925 = vld [vmem:[#allocation2 + $0x8] sm:$0xf]
      %v926 = vld [vmem:[%s523] ss:$8 sm:$0x3]
      %v928 = vlaneseq
      %v929 = vshrl.u32 %v928, 7
      %v930 = vsub.s32 0, %v929
      %v931 = vrot.slane %v926, %v930
      %v932 = vlaneseq
      %v933 = vshrl.u32 %v932, 7
      %v934 = vsub.s32 1, %v933
      %v935 = vrot.slane %v926, %v934
      %v936 = vcombine.low %v931, %v935
      %937 = vrot.lane.b32.xlu0 %v936, 34
      %v938 = vpop.permute.xlu0 %937
      %v939 = vrot.slane %v938, 4
      %v940 = vsel %vm374, %v939, %v938
      %v943 = vmul.f32 %v924, %v940
      %v944 = vmul.f32 %v925, %v939
      %v947 = vcombine.high %v943, %v943
      %948 = vrot.lane.b32.xlu0 %v943, 94
      %v949 = vpop.permute.xlu0 %948
      %950 = vrot.lane.b32.xlu0 %v947, 94
      %v951 = vpop.permute.xlu0 %950
      %952 = vrot.lane.b32.xlu0 %v944, 94
      %v953 = vpop.permute.xlu0 %952
      %v954 = vsel %vm552, %v949, %v951
      %v955 = vsel %vm552, %v951, %v953
      %958 = vst [vmem:[#allocation3 + $0x20] sm:$0xf] %v954
      %959 = vst [vmem:[#allocation3 + $0x28] sm:$0xf] %v955
      %v960 = vld [vmem:[#allocation2] sm:$0xff]
      %v961 = vld [vmem:[#allocation2 + $0x8] sm:$0xf]
      %v962 = vld [vmem:[%s561] ss:$8 sm:$0x3]
      %v964 = vlaneseq
      %v965 = vshrl.u32 %v964, 7
      %v966 = vsub.s32 0, %v965
      %v967 = vrot.slane %v962, %v966
      %v968 = vlaneseq
      %v969 = vshrl.u32 %v968, 7
      %v970 = vsub.s32 1, %v969
      %v971 = vrot.slane %v962, %v970
      %v972 = vcombine.low %v967, %v971
      %973 = vrot.lane.b32.xlu0 %v972, 36
      %v974 = vpop.permute.xlu0 %973
      %v975 = vrot.slane %v974, 4
      %v976 = vsel %vm576, %v975, %v974
      %v979 = vmul.f32 %v960, %v976
      %v980 = vmul.f32 %v961, %v975
      %v983 = vcombine.low %v979, %v979
      %v984 = vcombine.low %v980, %v980
      %985 = vrot.lane.b32.xlu0 %v983, 92
      %v986 = vpop.permute.xlu0 %985
      %987 = vrot.lane.b32.xlu0 %v979, 92
      %v988 = vpop.permute.xlu0 %987
      %989 = vrot.lane.b32.xlu0 %v984, 92
      %v990 = vpop.permute.xlu0 %989
      %v991 = vsel %vm592, %v986, %v988
      %v992 = vsel %vm592, %v988, %v990
      %995 = vst [vmem:[#allocation3 + $0x20] sm:$0xf0] %v991
      %996 = vst [vmem:[#allocation3 + $0x28] sm:$0xf0] %v992
      %v997 = vld [vmem:[#allocation2] sm:$0xff]
      %v998 = vld [vmem:[#allocation2 + $0x8] sm:$0xf]
      %v999 = vld [vmem:[%s601] ss:$8 sm:$0x3]
      %v1001 = vlaneseq
      %v1002 = vshrl.u32 %v1001, 7
      %v1003 = vsub.s32 0, %v1002
      %v1004 = vrot.slane %v999, %v1003
      %v1005 = vlaneseq
      %v1006 = vshrl.u32 %v1005, 7
      %v1007 = vsub.s32 1, %v1006
      %v1008 = vrot.slane %v999, %v1007
      %v1009 = vcombine.low %v1004, %v1008
      %1010 = vrot.lane.b32.xlu0 %v1009, 64
      %v1011 = vpop.permute.xlu0 %1010
      %v1012 = vrot.slane %v1011, 4
      %v1013 = vsel %vm616, %v1012, %v1011
      %v1016 = vmul.f32 %v997, %v1013
      %v1017 = vmul.f32 %v998, %v1012
      %v1020 = vcombine.high %v1016, %v1016
      %1021 = vrot.lane.b32.xlu0 %v1016, 64
      %v1022 = vpop.permute.xlu0 %1021
      %1023 = vrot.lane.b32.xlu0 %v1020, 64
      %v1024 = vpop.permute.xlu0 %1023
      %1025 = vrot.lane.b32.xlu0 %v1017, 64
      %v1026 = vpop.permute.xlu0 %1025
      %v1027 = vsel %vm616, %v1022, %v1024
      %v1028 = vsel %vm616, %v1024, %v1026
      %1031 = vst [vmem:[#allocation3 + $0x30] sm:$0xf] %v1027
      %1032 = vst [vmem:[#allocation3 + $0x38] sm:$0xf] %v1028
      %v1033 = vld [vmem:[#allocation2] sm:$0xff]
      %v1034 = vld [vmem:[#allocation2 + $0x8] sm:$0xf]
      %v1035 = vld [vmem:[%s639] ss:$8 sm:$0x3]
      %v1037 = vlaneseq
      %v1038 = vshrl.u32 %v1037, 7
      %v1039 = vsub.s32 0, %v1038
      %v1040 = vrot.slane %v1035, %v1039
      %v1041 = vlaneseq
      %v1042 = vshrl.u32 %v1041, 7
      %v1043 = vsub.s32 1, %v1042
      %v1044 = vrot.slane %v1035, %v1043
      %v1045 = vcombine.low %v1040, %v1044
      %1046 = vrot.lane.b32.xlu0 %v1045, 66
      %v1047 = vpop.permute.xlu0 %1046
      %v1048 = vrot.slane %v1047, 4
      %v1049 = vsel %vm654, %v1048, %v1047
      %v1052 = vmul.f32 %v1033, %v1049
      %v1053 = vmul.f32 %v1034, %v1048
      %v1056 = vcombine.low %v1052, %v1052
      %v1057 = vcombine.low %v1053, %v1053
      %1058 = vrot.lane.b32.xlu0 %v1056, 62
      %v1059 = vpop.permute.xlu0 %1058
      %1060 = vrot.lane.b32.xlu0 %v1052, 62
      %v1061 = vpop.permute.xlu0 %1060
      %1062 = vrot.lane.b32.xlu0 %v1057, 62
      %v1063 = vpop.permute.xlu0 %1062
      %v1064 = vsel %vm670, %v1059, %v1061
      %v1065 = vsel %vm670, %v1061, %v1063
      %1068 = vst [vmem:[#allocation3 + $0x30] sm:$0xf0] %v1064
      %1069 = vst [vmem:[#allocation3 + $0x38] sm:$0xf0] %v1065
      %v1070 = vld [vmem:[#allocation2] sm:$0xff]
      %v1071 = vld [vmem:[#allocation2 + $0x8] sm:$0xf]
      %v1072 = vld [vmem:[%s679] ss:$8 sm:$0x3]
      %v1074 = vlaneseq
      %v1075 = vshrl.u32 %v1074, 7
      %v1076 = vsub.s32 0, %v1075
      %v1077 = vrot.slane %v1072, %v1076
      %v1078 = vlaneseq
      %v1079 = vshrl.u32 %v1078, 7
      %v1080 = vsub.s32 1, %v1079
      %v1081 = vrot.slane %v1072, %v1080
      %v1082 = vcombine.low %v1077, %v1081
      %1083 = vrot.lane.b32.xlu0 %v1082, 68
      %v1084 = vpop.permute.xlu0 %1083
      %v1085 = vrot.slane %v1084, 4
      %v1086 = vsel %vm694, %v1085, %v1084
      %v1089 = vmul.f32 %v1070, %v1086
      %v1090 = vmul.f32 %v1071, %v1085
      %v1093 = vcombine.high %v1089, %v1089
      %1094 = vrot.lane.b32.xlu0 %v1089, 60
      %v1095 = vpop.permute.xlu0 %1094
      %1096 = vrot.lane.b32.xlu0 %v1093, 60
      %v1097 = vpop.permute.xlu0 %1096
      %1098 = vrot.lane.b32.xlu0 %v1090, 60
      %v1099 = vpop.permute.xlu0 %1098
      %v1100 = vsel %vm709, %v1095, %v1097
      %v1101 = vsel %vm709, %v1097, %v1099
      %1104 = vst [vmem:[#allocation3 + $0x40] sm:$0xf] %v1100
      %1105 = vst [vmem:[#allocation3 + $0x48] sm:$0xf] %v1101
      %v1106 = vld [vmem:[#allocation3] sm:$0xff]
      %v1107 = vld [vmem:[#allocation3 + $0x8] sm:$0xff]
      %v1108 = vld [vmem:[#allocation3 + $0x10] sm:$0xff]
      %v1109 = vld [vmem:[#allocation3 + $0x18] sm:$0xff]
      %v1110 = vld [vmem:[#allocation3 + $0x20] sm:$0xff]
      %v1111 = vld [vmem:[#allocation3 + $0x28] sm:$0xff]
      %v1112 = vld [vmem:[#allocation3 + $0x30] sm:$0xff]
      %v1113 = vld [vmem:[#allocation3 + $0x38] sm:$0xff]
      %v1114 = vld [vmem:[#allocation3 + $0x40] sm:$0xf]
      %v1115 = vld [vmem:[#allocation3 + $0x48] sm:$0xf]
      %v1116 = vpack.c.bf16 %v1108, %v1106
      %v1117 = vpack.c.bf16 %v1109, %v1107
      %v1118 = vpack.c.bf16 %v1112, %v1110
      %v1119 = vpack.c.bf16 %v1113, %v1111
      %v1120 = vpack.c.bf16 %v1114, %v1114
      %v1121 = vpack.c.bf16 %v1115, %v1115
      %v1123 = vsel %vm576, %v783, 0
      %v1126 = vsel %vm735, %v1120, 0
      %v1129 = vsel %vm735, %v1121, 0
      %1131 = vmatprep.subr.bf16.mxu0 0
      %1132 = vmatpush1.bf16.msra.mxu0 0
      %1133 = vmatprep.subr.bf16.mxu0 0
      %1134 = vmatpush1.bf16.msra.mxu0 0
      %1135 = vmatprep.subr.bf16.mxu0 0
      %1136 = vmatpush1.bf16.msra.mxu0 0
      %1137 = vmatprep.subr.bf16.mxu0 0
      %1138 = vmatpush1.bf16.msra.mxu0 0
      %1139 = vmatprep.subr.bf16.mxu0 0
      %1140 = vmatpush1.bf16.msra.mxu0 0
      %1141 = vmatprep.subr.bf16.mxu0 %v1129
      %1142 = vmatpush1.bf16.msra.mxu0 %v1126
      %1143 = vmatprep.subr.bf16.mxu0 %v1119
      %1144 = vmatpush1.bf16.msra.mxu0 %v1118
      %1145 = vmatprep.subr.bf16.mxu0 %v1117
      %1146 = vmatpush1.bf16.msra.mxu0 %v1116
      %1147 = vmatprep.subr.bf16.mxu0 0
      %1148 = vmatpush2.bf16.msra.mxu0 0
      %1149 = vmatprep.subr.bf16.mxu0 0
      %1150 = vmatpush2.bf16.msra.mxu0 0
      %1151 = vmatprep.subr.bf16.mxu0 0
      %1152 = vmatpush2.bf16.msra.mxu0 0
      %1153 = vmatprep.subr.bf16.mxu0 0
      %1154 = vmatpush2.bf16.msra.mxu0 0
      %1155 = vmatprep.subr.bf16.mxu0 0
      %1156 = vmatpush2.bf16.msra.mxu0 0
      %1157 = vmatprep.subr.bf16.mxu0 0
      %1158 = vmatpush2.bf16.msra.mxu0 0
      %1159 = vmatprep.subr.bf16.mxu0 0
      %1160 = vmatpush2.bf16.msra.mxu0 0
      %1161 = vmatprep.subr.bf16.mxu0 0
      %1162 = vmatpush2.bf16.msra.mxu0 0
      %1163 = vmatprep.mubr.bf16.mxu0 0
      %1164 = vmatmul.mubr.bf16.gmra.mxu0 %v1123
      %v1165 = vpop.f32.mrf.mxu0
      %v1166 = vadd.f32 0.0, %v1165
      %v1167 = vpop.f32.mrf.mxu0
      %v1168 = vadd.f32 0.0, %v1167
      %v1169 = vpop.f32.mrf.mxu0
      %v1170 = vpop.f32.mrf.mxu0
      %1171 = vdwg.mxu0
      %v1174 = vcombine.low %v1166, %v1168
      %v1176 = vunpack.c.l.s4 1966171168
      %v1177 = vunpack.c.0.s8 %v1176
      %v1178 = vlaneseq
      %v1179 = vshrl.u32 %v1178, 7
      %v1180 = vsub.s32 %v1177, %v1179
      %v1181 = vrot.slane %v1174, %v1180
      %v1183 = vunpack.c.l.s4 1966171168
      %v1184 = vunpack.c.0.s8 %v1183
      %v1185 = vlaneseq
      %v1186 = vshrl.u32 %v1185, 7
      %v1187 = vsub.s32 %v1184, %v1186
      %v1188 = vrot.slane %v1181, %v1187
      %v1190 = vlaneseq
      %vm1191 = vcmp.ge.s32.totalorder %v1190, 0
      %vm1192 = vcmp.lt.s32.totalorder %v1190, 256
      %vm1193 = vmand %vm1191, %vm1192
      %1194 = vst.msk [vmem:[%s294] sm:$0x3] %vm1193, %v1188
      %vm1195 = vcmask 1040384
      %v1196 = vsel %vm1195, %v1166, 0.0
      %v1197 = vsel %vm1195, %v1168, 0.0
      %v1198 = vadd.f32 %v1196, %v1197
      %1199 = vadd.xlane.f32.xlu0 %v1198
      %v1200 = vpop.xlane.xlu0 %1199
      %v1201 = vrot.slane %v1200, 4
      %v1202 = vadd.f32 %v1200, %v1201
      %v1203 = vrot.slane %v1202, 2
      %v1204 = vadd.f32 %v1202, %v1203
      %v1205 = vrot.slane %v1204, 1
      %v1206 = vadd.f32 %v1204, %v1205
      %s1207 = vtos %v1206
      %v1208 = vmul.f32 %v1166, %v1166
      %v1209 = vmul.f32 %v1168, %v1168
      %v1210 = vsel %vm1195, %v1208, 0.0
      %v1211 = vsel %vm1195, %v1209, 0.0
      %v1212 = vadd.f32 %v1210, %v1211
      %1213 = vadd.xlane.f32.xlu0 %v1212
      %v1214 = vpop.xlane.xlu0 %1213
      %v1215 = vrot.slane %v1214, 4
      %v1216 = vadd.f32 %v1214, %v1215
      %v1217 = vrot.slane %v1216, 2
      %v1218 = vadd.f32 %v1216, %v1217
      %v1219 = vrot.slane %v1218, 1
      %v1220 = vadd.f32 %v1218, %v1219
      %s1221 = vtos %v1220
      %v1222 = vlaneseq
      %v1223 = vand.u32 %v1222, 127
      %vm1224 = vcmp.eq.s32.totalorder %v1223, 0
      %v1225 = vstv %s1207
      %v1226 = vstv %s1221
      %v1227 = vsel %vm1224, %v1225, %v1226
      %vm1228 = vcmask 8192
      %1229 = vst.msk [vmem:[%s297] sm:$0x1] %vm1228, %v1227
      %p1230 = scmp.lt.s32.totalorder %s19, 1
      %s1231 = scalar_select %p1230, %s19, 1
      %s1232 = smul.addr %s1231, 2
      %s1233 = smul.addr %s1232, 8
      %s1234 = scalar_lea.vmem %s5, %s1233
      %p1235 = scmp.lt.s32.totalorder %s19, 1
      %s1236 = scalar_select %p1235, %s19, 1
      %s1237 = smul.addr %s1236, 2
      %s1238 = scalar_lea.vmem %s6, %s1237
      %p1239 = scmp.lt.s32.totalorder %s19, 1
      %s1240 = scalar_select %p1239, %s19, 1
      %s1241 = scalar_lea.vmem %s7, %s1240
      // Predicated region
      $region41: #{_lambda_.3} parent=39 // pred_check
        %p1242 = pneg %p147
      $region42: #{_lambda_.3} parent=39 // pred_check_branch
        %1244 = sbr.rel (%p1242) target = $region44
      $region43: #{_lambda_.3} parent=39 // pred_region
        _
      $region44: #{_lambda_.3} parent=39 // pred_fallthru
        _
      // Predicated region
      $region45: #{_lambda_.3} parent=39 // pred_check
        %p1245 = pneg %p173
      $region46: #{_lambda_.3} parent=39 // pred_check_branch
        %1247 = sbr.rel (%p1245) target = $region48
      $region47: #{_lambda_.3} parent=39 // pred_region
        _
      $region48: #{_lambda_.3} parent=39 // pred_fallthru
        _
      // Predicated region
      $region49: #{_lambda_.3} parent=39 // pred_check
        %p1248 = pneg %p199
      $region50: #{_lambda_.3} parent=39 // pred_check_branch
        %1250 = sbr.rel (%p1248) target = $region52
      $region51: #{_lambda_.3} parent=39 // pred_region
        _
      $region52: #{_lambda_.3} parent=39 // pred_fallthru
        _
    $region40: #{_lambda_.3} parent=5 // pred_fallthru
      _
    %p1251 = scmp.le.s32.totalorder 2, %s14
    // Predicated region
    $region53: #{_lambda_.3} parent=5 // pred_check
      %p1252 = pneg %p1251
    $region54: #{_lambda_.3} parent=5 // pred_check_branch
      %1254 = sbr.rel (%p1252) target = $region56
    $region55: #{_lambda_.3} parent=5 // pred_region
      %s1255 = ssub.s32 %s14, 2
      // Predicated region
      $region57: #{_lambda_.3} parent=55 // pred_check
        %p1256 = pneg %p153
      $region58: #{_lambda_.3} parent=55 // pred_check_branch
        %1258 = sbr.rel (%p1256) target = $region60
      $region59: #{_lambda_.3} parent=55 // pred_region
        %p1259 = scmp.lt.s32.totalorder %s20, 1
        %s1260 = scalar_select %p1259, %s20, 1
        %s1261 = smul.addr %s1260, 2
        %s1262 = smul.addr %s1261, 8
        %s1263 = scalar_lea.vmem %s5, %s1262
      $region60: #{_lambda_.3} parent=55 // pred_fallthru
        _
      // Predicated region
      $region61: #{_lambda_.3} parent=55 // pred_check
        %p1264 = pneg %p179
      $region62: #{_lambda_.3} parent=55 // pred_check_branch
        %1266 = sbr.rel (%p1264) target = $region64
      $region63: #{_lambda_.3} parent=55 // pred_region
        %p1267 = scmp.lt.s32.totalorder %s20, 1
        %s1268 = scalar_select %p1267, %s20, 1
        %s1269 = smul.addr %s1268, 2
        %s1270 = scalar_lea.vmem %s6, %s1269
      $region64: #{_lambda_.3} parent=55 // pred_fallthru
        _
      // Predicated region
      $region65: #{_lambda_.3} parent=55 // pred_check
        %p1271 = pneg %p205
      $region66: #{_lambda_.3} parent=55 // pred_check_branch
        %1273 = sbr.rel (%p1271) target = $region68
      $region67: #{_lambda_.3} parent=55 // pred_region
        %p1274 = scmp.lt.s32.totalorder %s20, 1
        %s1275 = scalar_select %p1274, %s20, 1
        %s1276 = scalar_lea.vmem %s7, %s1275
      $region68: #{_lambda_.3} parent=55 // pred_fallthru
        _
    $region56: #{_lambda_.3} parent=5 // pred_fallthru
      _
  $region6: #{_lambda_.3} parent=0 // loop_footer
    %s18 = sadd.s32 1, %s14
  $region7: #{_lambda_.3} parent=0 // loop_footer_branch
    %13 = sbr.rel target = $region3
  $region8: #{_lambda_.3} parent=0 // loop_exit
    _

// kernel: _lambda_.4
$region0: #{_lambda_.4}
  #allocation0 [shape = 'u32[]', space=smem, size = 0x4, offset = 0x4, fixed_abs, tag = 'smem constant byte address 0x4 - core index']
  #allocation1 [shape = 'u32[144,128]{1,0:T(1,128)}', space=vmem, size = 0x12000, scoped, tag = 'internal scratch']
  %s0 = inlined_call_operand.vmem [shape: f32[2,16], index: 0, kind: input, shape index: {}]
  %s1 = inlined_call_operand.vmem [shape: f32[16,4], index: 1, kind: input, shape index: {}]
  %s2 = inlined_call_operand.vmem [shape: f32[1,4], index: 2, kind: input, shape index: {}]
  %s3 = inlined_call_operand.vmem [shape: f32[4,16], index: 3, kind: input, shape index: {}]
  %s4 = inlined_call_operand.vmem [shape: f32[1,16], index: 4, kind: input, shape index: {}]
  %s5 = inlined_call_operand.vmem [shape: f32[2,1,2], index: 5, kind: input, shape index: {}]
  %s6 = inlined_call_operand.vmem [shape: f32[2,16], index: 6, kind: output, shape index: {0}]
  %s7 = inlined_call_operand.vmem [shape: f32[1,2], index: 7, kind: output, shape index: {1}]
  %8 = xla_tuple %s6, %s7
  %s9 = sld [smem:[#allocation0]]
  $region42: #{_lambda_.4} parent=0
    _
  %s11 = ssub.s32 1, %s9
  %s12 = scalar_select 0, %s11, %s9
  // Predicated region
  $region2: #{_lambda_.4} parent=0 // pred_check
    _
  $region3: #{_lambda_.4} parent=0 // pred_check_branch
    %14 = sbr.rel (0) target = $region5
  $region4: #{_lambda_.4} parent=0 // pred_region
    _
  $region5: #{_lambda_.4} parent=0 // pred_fallthru
    _
  // Predicated region
  $region6: #{_lambda_.4} parent=0 // pred_check
    _
  $region7: #{_lambda_.4} parent=0 // pred_check_branch
    %16 = sbr.rel (0) target = $region9
  $region8: #{_lambda_.4} parent=0 // pred_region
    _
  $region9: #{_lambda_.4} parent=0 // pred_fallthru
    _
  // Predicated region
  $region10: #{_lambda_.4} parent=0 // pred_check
    _
  $region11: #{_lambda_.4} parent=0 // pred_check_branch
    %18 = sbr.rel (0) target = $region13
  $region12: #{_lambda_.4} parent=0 // pred_region
    _
  $region13: #{_lambda_.4} parent=0 // pred_fallthru
    _
  // Predicated region
  $region14: #{_lambda_.4} parent=0 // pred_check
    _
  $region15: #{_lambda_.4} parent=0 // pred_check_branch
    %20 = sbr.rel (0) target = $region17
  $region16: #{_lambda_.4} parent=0 // pred_region
    _
  $region17: #{_lambda_.4} parent=0 // pred_fallthru
    _
  // Predicated region
  $region18: #{_lambda_.4} parent=0 // pred_check
    _
  $region19: #{_lambda_.4} parent=0 // pred_check_branch
    %22 = sbr.rel (0) target = $region21
  $region20: #{_lambda_.4} parent=0 // pred_region
    _
  $region21: #{_lambda_.4} parent=0 // pred_fallthru
    _
  // Predicated region
  $region22: #{_lambda_.4} parent=0 // pred_check
    _
  $region23: #{_lambda_.4} parent=0 // pred_check_branch
    %24 = sbr.rel (0) target = $region25
  $region24: #{_lambda_.4} parent=0 // pred_region
    _
  $region25: #{_lambda_.4} parent=0 // pred_fallthru
    _
  %v25 = vld [vmem:[%s0] sm:$0x3]
  %v26 = vld [vmem:[%s1] sm:$0xff]
  %v27 = vld [vmem:[%s1 + $0x8] sm:$0xff]
  %v28 = vld [vmem:[%s2] sm:$0x1]
  %v30 = vlaneseq
  %v31 = vshrl.u32 %v30, 7
  %v32 = vsub.s32 0, %v31
  %v33 = vrot.slane %v28, %v32
  %vm35 = vcmask 130048
  %v37 = vsel %vm35, %v25, 0
  %39 = vmatprep.subr.mxu0 0.0
  %40 = vmatpush1.msra.mxu0 0.0
  %41 = vmatprep.subr.mxu0 0.0
  %42 = vmatpush1.msra.mxu0 0.0
  %43 = vmatprep.subr.mxu0 0.0
  %44 = vmatpush1.msra.mxu0 0.0
  %45 = vmatprep.subr.mxu0 0.0
  %46 = vmatpush1.msra.mxu0 0.0
  %47 = vmatprep.subr.mxu0 0.0
  %48 = vmatpush1.msra.mxu0 0.0
  %49 = vmatprep.subr.mxu0 0.0
  %50 = vmatpush1.msra.mxu0 0.0
  %51 = vmatprep.subr.mxu0 0.0
  %52 = vmatpush1.msra.mxu0 0.0
  %53 = vmatprep.subr.mxu0 0.0
  %54 = vmatpush1.msra.mxu0 0.0
  %55 = vmatprep.subr.mxu0 0.0
  %56 = vmatpush1.msra.mxu0 0.0
  %57 = vmatprep.subr.mxu0 0.0
  %58 = vmatpush1.msra.mxu0 0.0
  %59 = vmatprep.subr.mxu0 0.0
  %60 = vmatpush1.msra.mxu0 0.0
  %61 = vmatprep.subr.mxu0 0.0
  %62 = vmatpush1.msra.mxu0 0.0
  %63 = vmatprep.subr.mxu0 0.0
  %64 = vmatpush1.msra.mxu0 0.0
  %65 = vmatprep.subr.mxu0 0.0
  %66 = vmatpush1.msra.mxu0 0.0
  %67 = vmatprep.subr.mxu0 0.0
  %68 = vmatpush1.msra.mxu0 %v27
  %69 = vmatprep.subr.mxu0 0.0
  %70 = vmatpush1.msra.mxu0 %v26
  %71 = vmatprep.subr.mxu0 0.0
  %72 = vmatpush2.msra.mxu0 0.0
  %73 = vmatprep.subr.mxu0 0.0
  %74 = vmatpush2.msra.mxu0 0.0
  %75 = vmatprep.subr.mxu0 0.0
  %76 = vmatpush2.msra.mxu0 0.0
  %77 = vmatprep.subr.mxu0 0.0
  %78 = vmatpush2.msra.mxu0 0.0
  %79 = vmatprep.subr.mxu0 0.0
  %80 = vmatpush2.msra.mxu0 0.0
  %81 = vmatprep.subr.mxu0 0.0
  %82 = vmatpush2.msra.mxu0 0.0
  %83 = vmatprep.subr.mxu0 0.0
  %84 = vmatpush2.msra.mxu0 0.0
  %85 = vmatprep.subr.mxu0 0.0
  %86 = vmatpush2.msra.mxu0 0.0
  %87 = vmatprep.subr.mxu0 0.0
  %88 = vmatpush2.msra.mxu0 0.0
  %89 = vmatprep.subr.mxu0 0.0
  %90 = vmatpush2.msra.mxu0 0.0
  %91 = vmatprep.subr.mxu0 0.0
  %92 = vmatpush2.msra.mxu0 0.0
  %93 = vmatprep.subr.mxu0 0.0
  %94 = vmatpush2.msra.mxu0 0.0
  %95 = vmatprep.subr.mxu0 0.0
  %96 = vmatpush2.msra.mxu0 0.0
  %97 = vmatprep.subr.mxu0 0.0
  %98 = vmatpush2.msra.mxu0 0.0
  %99 = vmatprep.subr.mxu0 0.0
  %100 = vmatpush2.msra.mxu0 0.0
  %101 = vmatprep.subr.mxu0 0.0
  %102 = vmatpush2.msra.mxu0 0.0
  %103 = vmatprep.mubr.f32.mxu0 0.0
  %104 = vmatmul.mubr.f32.gmra.mxu0 %v37
  %v105 = vpop.f32.mrf.mxu0
  %v106 = vadd.f32 %v33, %v105
  %v107 = vpop.f32.mrf.mxu0
  %108 = vdwg.mxu0
  %v109 = vld [vmem:[%s3] sm:$0xf]
  %v110 = vld [vmem:[%s4] sm:$0x1]
  %v112 = vlaneseq
  %v113 = vshrl.u32 %v112, 7
  %v114 = vsub.s32 0, %v113
  %v115 = vrot.slane %v110, %v114
  %vm117 = vcmask 31744
  %v119 = vsel %vm117, %v106, 0
  %vm121 = vcmask 1043456
  %v123 = vsel %vm121, %v109, 0
  %125 = vmatprep.subr.mxu0 0.0
  %126 = vmatpush1.msra.mxu0 0.0
  %127 = vmatprep.subr.mxu0 0.0
  %128 = vmatpush1.msra.mxu0 0.0
  %129 = vmatprep.subr.mxu0 0.0
  %130 = vmatpush1.msra.mxu0 0.0
  %131 = vmatprep.subr.mxu0 0.0
  %132 = vmatpush1.msra.mxu0 0.0
  %133 = vmatprep.subr.mxu0 0.0
  %134 = vmatpush1.msra.mxu0 0.0
  %135 = vmatprep.subr.mxu0 0.0
  %136 = vmatpush1.msra.mxu0 0.0
  %137 = vmatprep.subr.mxu0 0.0
  %138 = vmatpush1.msra.mxu0 0.0
  %139 = vmatprep.subr.mxu0 0.0
  %140 = vmatpush1.msra.mxu0 0.0
  %141 = vmatprep.subr.mxu0 0.0
  %142 = vmatpush1.msra.mxu0 0.0
  %143 = vmatprep.subr.mxu0 0.0
  %144 = vmatpush1.msra.mxu0 0.0
  %145 = vmatprep.subr.mxu0 0.0
  %146 = vmatpush1.msra.mxu0 0.0
  %147 = vmatprep.subr.mxu0 0.0
  %148 = vmatpush1.msra.mxu0 0.0
  %149 = vmatprep.subr.mxu0 0.0
  %150 = vmatpush1.msra.mxu0 0.0
  %151 = vmatprep.subr.mxu0 0.0
  %152 = vmatpush1.msra.mxu0 0.0
  %153 = vmatprep.subr.mxu0 0.0
  %154 = vmatpush1.msra.mxu0 0.0
  %155 = vmatprep.subr.mxu0 0.0
  %156 = vmatpush1.msra.mxu0 %v123
  %157 = vmatprep.subr.mxu0 0.0
  %158 = vmatpush2.msra.mxu0 0.0
  %159 = vmatprep.subr.mxu0 0.0
  %160 = vmatpush2.msra.mxu0 0.0
  %161 = vmatprep.subr.mxu0 0.0
  %162 = vmatpush2.msra.mxu0 0.0
  %163 = vmatprep.subr.mxu0 0.0
  %164 = vmatpush2.msra.mxu0 0.0
  %165 = vmatprep.subr.mxu0 0.0
  %166 = vmatpush2.msra.mxu0 0.0
  %167 = vmatprep.subr.mxu0 0.0
  %168 = vmatpush2.msra.mxu0 0.0
  %169 = vmatprep.subr.mxu0 0.0
  %170 = vmatpush2.msra.mxu0 0.0
  %171 = vmatprep.subr.mxu0 0.0
  %172 = vmatpush2.msra.mxu0 0.0
  %173 = vmatprep.subr.mxu0 0.0
  %174 = vmatpush2.msra.mxu0 0.0
  %175 = vmatprep.subr.mxu0 0.0
  %176 = vmatpush2.msra.mxu0 0.0
  %177 = vmatprep.subr.mxu0 0.0
  %178 = vmatpush2.msra.mxu0 0.0
  %179 = vmatprep.subr.mxu0 0.0
  %180 = vmatpush2.msra.mxu0 0.0
  %181 = vmatprep.subr.mxu0 0.0
  %182 = vmatpush2.msra.mxu0 0.0
  %183 = vmatprep.subr.mxu0 0.0
  %184 = vmatpush2.msra.mxu0 0.0
  %185 = vmatprep.subr.mxu0 0.0
  %186 = vmatpush2.msra.mxu0 0.0
  %187 = vmatprep.subr.mxu0 0.0
  %188 = vmatpush2.msra.mxu0 0.0
  %189 = vmatprep.mubr.f32.mxu0 0.0
  %190 = vmatmul.mubr.f32.gmra.mxu0 %v119
  %v191 = vpop.f32.mrf.mxu0
  %v192 = vadd.f32 %v115, %v191
  %v193 = vpop.f32.mrf.mxu0
  %194 = vdwg.mxu0
  %vm195 = vcmask 123904
  %v196 = vsel %vm195, %v192, 0.0
  %v197 = vrot.slane %v196, 4
  %v198 = vadd.f32 %v196, %v197
  %v199 = vrot.slane %v198, 2
  %v200 = vadd.f32 %v198, %v199
  %v201 = vrot.slane %v200, 1
  %v202 = vadd.f32 %v200, %v201
  %v203 = vrcp.pop 2.0
  %v204 = vmul.f32 %v202, %v203
  %v205 = vsub.f32 %v192, %v204
  %v206 = vmul.f32 %v205, %v205
  %v207 = vsel %vm195, %v206, 0.0
  %v208 = vrot.slane %v207, 4
  %v209 = vadd.f32 %v207, %v208
  %v210 = vrot.slane %v209, 2
  %v211 = vadd.f32 %v209, %v210
  %v212 = vrot.slane %v211, 1
  %v213 = vadd.f32 %v211, %v212
  %v214 = vmul.f32 %v213, %v203
  %v215 = vadd.f32 %v214, 1e-05
  %v216 = vrsqrt.pop %v215
  %v217 = vmul.f32 %v205, %v216
  %218 = vst.msk [vmem:[%s6] sm:$0x3] %vm195, %v217
  %v219 = vld [vmem:[%s5] sm:$0x1]
  %v220 = vld [vmem:[%s5 + $0x1] sm:$0x1]
  %vm221 = vcmask 8192
  %v222 = vsel %vm221, %v219, 0.0
  %v223 = vsel %vm221, %v220, 0.0
  %v224 = vadd.f32 %v222, %v223
  %v225 = vlaneseq
  %v226 = vand.u32 %v225, 127
  %vm227 = vcmp.eq.s32.totalorder %v226, 0
  %v228 = vsel %vm227, %v224, 0.0
  %v229 = vsel %vm221, %v228, 0.0
  %230 = vadd.xlane.f32.xlu0 %v229
  %v231 = vpop.xlane.xlu0 %230
  %v232 = vrot.slane %v231, 4
  %v233 = vadd.f32 %v231, %v232
  %v234 = vrot.slane %v233, 2
  %v235 = vadd.f32 %v233, %v234
  %v236 = vrot.slane %v235, 1
  %v237 = vadd.f32 %v235, %v236
  %s238 = vtos %v237
  %vm239 = vcmp.eq.s32.totalorder %v226, 1
  %v240 = vsel %vm239, %v224, 0.0
  %v241 = vsel %vm221, %v240, 0.0
  %242 = vadd.xlane.f32.xlu0 %v241
  %v243 = vpop.xlane.xlu0 %242
  %v244 = vrot.slane %v243, 4
  %v245 = vadd.f32 %v243, %v244
  %v246 = vrot.slane %v245, 2
  %v247 = vadd.f32 %v245, %v246
  %v248 = vrot.slane %v247, 1
  %v249 = vadd.f32 %v247, %v248
  %s250 = vtos %v249
  %v251 = vrcp.pop 512.0
  %s252 = vtos %v251
  %s253 = smul.f32 %s238, %s252
  %v254 = vrcp.pop 512.0
  %s255 = vtos %v254
  %s256 = smul.f32 %s250, %s255
  %s257 = smul.f32 %s253, %s253
  %s258 = ssub.f32 %s256, %s257
  %s259 = smax.f32 %s258, 0.0
  %s260 = sadd.f32 %s259, 1e-05
  %v261 = vstv %s260
  %v262 = vrsqrt.pop %v261
  %s263 = vtos %v262
  %v264 = vstv %s253
  %v265 = vstv %s263
  %v266 = vsel %vm227, %v264, %v265
  %267 = vst.msk [vmem:[%s7] sm:$0x1] %vm221, %v266
  // Predicated region
  $region26: #{_lambda_.4} parent=0 // pred_check
    _
  $region27: #{_lambda_.4} parent=0 // pred_check_branch
    %269 = sbr.rel (0) target = $region29
  $region28: #{_lambda_.4} parent=0 // pred_region
    _
  $region29: #{_lambda_.4} parent=0 // pred_fallthru
    _
  // Predicated region
  $region30: #{_lambda_.4} parent=0 // pred_check
    _
  $region31: #{_lambda_.4} parent=0 // pred_check_branch
    %271 = sbr.rel (0) target = $region33
  $region32: #{_lambda_.4} parent=0 // pred_region
    _
  $region33: #{_lambda_.4} parent=0 // pred_fallthru
    _
  // Predicated region
  $region34: #{_lambda_.4} parent=0 // pred_check
    _
  $region35: #{_lambda_.4} parent=0 // pred_check_branch
    %273 = sbr.rel (0) target = $region37
  $region36: #{_lambda_.4} parent=0 // pred_region
    _
  $region37: #{_lambda_.4} parent=0 // pred_fallthru
    _
  // Predicated region
  $region38: #{_lambda_.4} parent=0 // pred_check
    _
  $region39: #{_lambda_.4} parent=0 // pred_check_branch
    %275 = sbr.rel (0) target = $region41
  $region40: #{_lambda_.4} parent=0 // pred_region
    _
  $region41: #{_lambda_.4} parent=0 // pred_fallthru
    _

</llo_original>
